<compile_context>
chip_gen: v7x
topology: tpu7x:2x2x1
jax: 0.10.0
libtpu: 0.0.40
codegen_flags: <defaults>
</compile_context>

<pallas_src>
import math
from functools import partial

import jax
import jax.numpy as jnp
from jax import lax
from jax.experimental import pallas as pl
from jax.experimental.pallas import tpu as pltpu


# -----------------------------------------------------------------------------
# Pallas kernels — the only O(N) work in the forward pass.
# -----------------------------------------------------------------------------
def _gram_kernel(emb_ref, key_ref, ek_ref, kk_ref, *, n4_valid, needs_mask):
    """Accumulate folded gram matrices over row tiles.

    emb_ref: (tm4, fold*D)        Embed0 with `fold` rows packed into lanes.
    key_ref: (H, tm4, fold*Dh)    Key in its native head-major layout, folded.
    ek_ref:  (fold*D, fold*D) f32 accumulates emb_fold^T @ kcat   (resident).
    kk_ref:  (fold*D, fold*D) f32 accumulates kcat^T   @ kcat     (resident).

    Grid axis 0 walks row tiles (a reduction -> "arbitrary"); the outputs keep a
    constant block index so they stay resident in VMEM across the whole grid.
    """
    @pl.when(pl.program_id(0) == 0)
    def _init():
        ek_ref[...] = jnp.zeros_like(ek_ref)
        kk_ref[...] = jnp.zeros_like(kk_ref)

    n_head = key_ref.shape[0]
    tm4 = emb_ref.shape[0]

    e = emb_ref[...]
    # Head-major -> lane-major: lane concat of the per-head folded slices.
    # (This replaces the old wrapper-side XLA transpose of Key; the pass is
    # memory bound so the lane shuffles hide under the DMA time.)
    kcat = jnp.concatenate([key_ref[h] for h in range(n_head)], axis=-1)

    if needs_mask:  # only emitted when the last row tile is partial
        rows = pl.program_id(0) * tm4 + lax.broadcasted_iota(jnp.int32, (tm4, 1), 0)
        valid = rows < n4_valid
        e = jnp.where(valid, e, jnp.zeros_like(e))
        kcat = jnp.where(valid, kcat, jnp.zeros_like(kcat))

    dn = (((0,), (0,)), ((), ()))  # contract over the (folded) row axis
    ek_ref[...] += lax.dot_general(e, kcat, dn, preferred_element_type=jnp.float32)
    kk_ref[...] += lax.dot_general(kcat, kcat, dn, preferred_element_type=jnp.float32)


def _output_kernel(emb_ref, key_ref, b_ref, out_ref):
    """out_fold = emb_fold + sum_h key_fold[h] @ kron(I_fold, psum_h).

    emb_ref: (tm4, fold*D)      key_ref: (H, tm4, fold*Dh)
    b_ref:   (H, fold*Dh, fold*D) f32 (precomputed kron factors)
    out_ref: (tm4, fold*D)      lane-dense, unmasked stores.
    Independent per row tile -> "parallel".
    """
    acc = emb_ref[...].astype(jnp.float32)
    for h in range(key_ref.shape[0]):
        acc = acc + jnp.dot(key_ref[h], b_ref[h], preferred_element_type=jnp.float32)
    out_ref[...] = acc.astype(out_ref.dtype)


# -----------------------------------------------------------------------------
# Forward pass
# -----------------------------------------------------------------------------
def hypergraph_transformer_forward(embed0, key, params, *, att_head, leaky,
                                   row_block=8192):
    """Pallas implementation of HypergraphTransormer.forward(Embed0, Key).

    embed0: (N, latdim)                     (f32 or bf16 — streamed as given)
    key:    (att_head, N, latdim//att_head) (f32 or bf16 — streamed as given)
    params: Hyper (M, D), V (D, D), V_prepare (D, D), W1 (L, M, M), W2 (L, M, M)
    returns (sum(lats), Hyper) exactly like the PyTorch module.
    """
    n, d = embed0.shape
    assert d % att_head == 0, "latdim must be divisible by att_head"
    dh = d // att_head
    assert key.shape == (att_head, n, dh), key.shape

    hyper = params["Hyper"]
    v_top = params["V"]
    v_prep = params["V_prepare"]
    w1 = params["W1"]
    w2 = params["W2"]
    n_layers = w1.shape[0]

    # ---- lane fold: free row-major reshapes, NO transpose of Key -------------
    # fold=4 for D=32 keeps the folded gram at 64 FLOP/byte (memory bound on all
    # of v5e/v6e/v7x for both f32 and bf16 streams) while making Embed0/out tiles
    # exactly 128 lanes wide.
    fold = max(1, 128 // d)
    n_pad = n if n % fold == 0 else n + (fold - n % fold)
    emb_p = embed0 if n_pad == n else jnp.pad(embed0, ((0, n_pad - n), (0, 0)))
    key_p = key if n_pad == n else jnp.pad(key, ((0, 0), (0, n_pad - n), (0, 0)))
    n4 = n_pad // fold
    fd, fdh = fold * d, fold * dh
    emb_fold = emb_p.reshape(n4, fd)                    # [r, j*D + c]  = Embed0[fold*r+j, c]
    key_fold = key_p.reshape(att_head, n4, fdh)         # [h, r, j*Dh+i] = Key[h, fold*r+j, i]

    # ---- row tiling (in folded rows); partial last tile handled in-kernel ----
    tile4 = max(8, ((row_block // fold) // 8) * 8)
    tm4 = n4 if n4 <= tile4 else tile4
    grid_n = (n4 + tm4 - 1) // tm4
    n4_out = grid_n * tm4
    needs_mask = (n4 % tm4) != 0
    cparams = dict(vmem_limit_bytes=32 * 1024 * 1024)   # v5e default is only 16 MiB

    # ---- Pallas pass 1: one streamed reduction over all N rows ---------------
    # TODO(synk): on v7x a 2-TensorCore split of this reduction (leading size-2
    # core-parallel axis + per-core partial (fd,fd) outputs summed in the
    # wrapper) would roughly double pass-1 streaming throughput.
    ekbig, kkbig = pl.pallas_call(
        partial(_gram_kernel, n4_valid=n4, needs_mask=needs_mask),
        out_shape=(jax.ShapeDtypeStruct((fd, fd), jnp.float32),
                   jax.ShapeDtypeStruct((fd, fd), jnp.float32)),
        grid=(grid_n,),
        in_specs=[pl.BlockSpec((tm4, fd), lambda i: (i, 0)),
                  pl.BlockSpec((att_head, tm4, fdh), lambda i: (0, i, 0))],
        out_specs=(pl.BlockSpec((fd, fd), lambda i: (0, 0)),
                   pl.BlockSpec((fd, fd), lambda i: (0, 0))),
        compiler_params=pltpu.CompilerParams(
            dimension_semantics=("arbitrary",), **cparams),
    )(emb_fold, key_fold)

    # Un-fold the grams: sum the fold-diagonal blocks (tiny arrays; XLA).
    ek = jnp.einsum('achai->chi',
                    ekbig.reshape(fold, d, att_head, fold, dh)).reshape(d, d)
    kk = jnp.einsum('haigak->higk',
                    kkbig.reshape(att_head, fold, dh, att_head, fold, dh)).reshape(d, d)

    # ---- per-layer core: (D x M) math, independent of N -> leave to XLA ------
    head_id = jnp.arange(d) // dh
    hmask = (head_id[:, None] == head_id[None, :]).astype(jnp.float32)

    def lrelu(x):
        return jnp.where(x >= 0, x, leaky * x)

    g = v_prep.T @ ek                                  # layer 1: (Embed0 @ Vp)^T @ Kflat
    psum = jnp.zeros((d, d), jnp.float32)
    for l in range(n_layers):
        t1 = (g * hmask) @ hyper.T                     # reshape(temlat1 @ hyper, [D, M])
        t2 = lrelu(t1 @ w1[l].T) + t1                  # lrelu(linear1(temlat1)) + temlat1
        t3 = lrelu(t2 @ w2[l].T) + t2                  # lrelu(linear2(temlat2)) + temlat2
        p = hyper.T @ (t3.T @ v_top)                   # hyper @ preNewLat (block-diagonal)
        pmask = p * hmask
        psum = psum + pmask                            # newLat_l = Kflat @ pmask
        if l + 1 < n_layers:
            g = (pmask @ v_prep).T @ kk                # next layer's Value @ Key

    # kron factors mapping the folded Key layout straight onto the folded output:
    # B[h][j'*Dh+i, j*D+c] = delta(j,j') * psum[h*Dh+i, c]
    eye_f = jnp.eye(fold, dtype=jnp.float32)
    psum_h = psum.reshape(att_head, dh, d)
    bmats = jnp.stack([jnp.kron(eye_f, psum_h[h]) for h in range(att_head)])

    # ---- Pallas pass 2: out = Embed0 + Kflat @ sum_l Pmask_l == sum(lats) -----
    out_fold = pl.pallas_call(
        _output_kernel,
        out_shape=jax.ShapeDtypeStruct((n4_out, fd), embed0.dtype),
        grid=(grid_n,),
        in_specs=[pl.BlockSpec((tm4, fd), lambda i: (i, 0)),
                  pl.BlockSpec((att_head, tm4, fdh), lambda i: (0, i, 0)),
                  pl.BlockSpec((att_head, fdh, fd), lambda i: (0, 0, 0))],
        out_specs=pl.BlockSpec((tm4, fd), lambda i: (i, 0)),
        compiler_params=pltpu.CompilerParams(
            dimension_semantics=("parallel",), **cparams),
    )(emb_fold, key_fold, bmats)

    out = out_fold[:n4].reshape(n_pad, d)[:n]
    return out, hyper


# -----------------------------------------------------------------------------
# Direct (un-collapsed) JAX reference for validation — literal torch translation
# -----------------------------------------------------------------------------
def reference_forward(embed0, key, params, *, att_head, leaky):
    n, d = embed0.shape
    dh = d // att_head
    hyper_param = params["Hyper"]
    v_top = params["V"]
    v_prep = params["V_prepare"]
    w1 = params["W1"]
    w2 = params["W2"]

    def lrelu(x):
        return jnp.where(x >= 0, x, leaky * x)

    lats = [embed0]
    for l in range(w1.shape[0]):
        node = lats[-1]
        value = jnp.transpose((node @ v_prep).reshape(-1, att_head, dh), (1, 2, 0))
        temlat1 = value @ key                                              # (H,Dh,Dh)
        hyper = jnp.transpose(hyper_param.reshape(-1, att_head, dh), (1, 2, 0))
        temlat1 = (temlat1 @ hyper).reshape(d, -1)                         # (D,M)
        temlat2 = lrelu(temlat1 @ w1[l].T) + temlat1
        temlat3 = lrelu(temlat2 @ w2[l].T) + temlat2
        pre = jnp.transpose((temlat3.T @ v_top).reshape(-1, att_head, dh), (1, 0, 2))
        pre = hyper @ pre                                                  # (H,Dh,Dh)
        newlat = key @ pre                                                 # (H,N,Dh)
        newlat = jnp.transpose(newlat, (1, 0, 2)).reshape(-1, d)
        lats.append(newlat)
    return sum(lats), hyper_param


# -----------------------------------------------------------------------------
# Deterministic init + smoke tests
# -----------------------------------------------------------------------------
def xavier_uniform(rng, shape, dtype=jnp.float32):
    fan_out, fan_in = shape[0], shape[1]
    bound = math.sqrt(6.0 / (fan_in + fan_out))
    return jax.random.uniform(rng, shape, dtype, minval=-bound, maxval=bound)


def _make_inputs(seed, n, latdim, att_head, hyper_num, layers):
    ks = jax.random.split(jax.random.PRNGKey(seed), 7)
    embed0 = jax.random.normal(ks[0], (n, latdim), jnp.float32)
    key_in = 0.1 * jax.random.normal(ks[1], (att_head, n, latdim // att_head),
                                     jnp.float32)
    params = {
        "Hyper": xavier_uniform(ks[2], (hyper_num, latdim)),
        "V": xavier_uniform(ks[3], (latdim, latdim)),
        "V_prepare": xavier_uniform(ks[4], (latdim, latdim)),
        "W1": jnp.stack([xavier_uniform(k, (hyper_num, hyper_num))
                         for k in jax.random.split(ks[5], layers)]),
        "W2": jnp.stack([xavier_uniform(k, (hyper_num, hyper_num))
                         for k in jax.random.split(ks[6], layers)]),
    }
    return embed0, key_in, params


if __name__ == "__main__":
    LATDIM, ATT_HEAD, HYPERNUM, LAYERS, LEAKY = 32, 4, 128, 2, 0.5

    def rel_err(a, b):
        return float(jnp.max(jnp.abs(a.astype(jnp.float32) - b)) /
                     (jnp.max(jnp.abs(b)) + 1e-6))

    # 1) f32, multi-tile grid (small row_block forces 4 row tiles; exact tiling).
    embed0, key_in, params = _make_inputs(0, 1024, LATDIM, ATT_HEAD, HYPERNUM, LAYERS)
    fwd = jax.jit(partial(hypergraph_transformer_forward,
                          att_head=ATT_HEAD, leaky=LEAKY, row_block=256))
    out, hyper_out = fwd(embed0, key_in, params)
    jax.block_until_ready(out)
    ref_out, _ = reference_forward(embed0, key_in, params,
                                   att_head=ATT_HEAD, leaky=LEAKY)
    assert out.shape == (1024, LATDIM), out.shape
    assert hyper_out.shape == (HYPERNUM, LATDIM), hyper_out.shape
    assert bool(jnp.all(hyper_out == params["Hyper"]))
    e1 = rel_err(out, ref_out)
    assert e1 < 1e-3, e1

    # 2) f32, ragged N (fold padding + partial last tile -> in-kernel masking).
    embed0, key_in, params = _make_inputs(1, 998, LATDIM, ATT_HEAD, HYPERNUM, LAYERS)
    out, _ = jax.jit(partial(hypergraph_transformer_forward,
                             att_head=ATT_HEAD, leaky=LEAKY, row_block=256)
                     )(embed0, key_in, params)
    jax.block_until_ready(out)
    ref_out, _ = reference_forward(embed0, key_in, params,
                                   att_head=ATT_HEAD, leaky=LEAKY)
    assert out.shape == (998, LATDIM), out.shape
    e2 = rel_err(out, ref_out)
    assert e2 < 1e-3, e2

    # 3) bf16 streaming (the v6e/v7x bandwidth option): inputs already bf16,
    #    f32 accumulation inside the kernels; default (large) row_block path.
    embed0, key_in, params = _make_inputs(2, 1024, LATDIM, ATT_HEAD, HYPERNUM, LAYERS)
    out_bf16, _ = jax.jit(partial(hypergraph_transformer_forward,
                                  att_head=ATT_HEAD, leaky=LEAKY)
                          )(embed0.astype(jnp.bfloat16),
                            key_in.astype(jnp.bfloat16), params)
    jax.block_until_ready(out_bf16)
    ref_out, _ = reference_forward(embed0, key_in, params,
                                   att_head=ATT_HEAD, leaky=LEAKY)
    e3 = rel_err(out_bf16, ref_out)
    assert e3 < 1e-1, e3

    print("KERNEL_OK")
</pallas_src>

<mosaic_0001>
module attributes {stable_mosaic.version = 11 : i64} {
  func.func @_gram_kernel(%arg0: i32, %arg1: memref<64x128xf32, #tpu.memory_space<vmem>>, %arg2: memref<4x64x32xf32, #tpu.memory_space<vmem>>, %arg3: memref<128x128xf32, #tpu.memory_space<vmem>>, %arg4: memref<128x128xf32, #tpu.memory_space<vmem>>) attributes {dimension_semantics = [#tpu.dimension_semantics<arbitrary>], iteration_bounds = array<i64: 4>, scalar_prefetch = 0 : i64, scratch_operands = 0 : i64, tpu.core_type = #tpu.core_type<tc>, window_params = [{transform_indices = @transform_0, window_bounds = array<i64: 64, 128>}, {transform_indices = @transform_1, window_bounds = array<i64: 4, 64, 32>}, {pipeline_mode = #tpu.pipeline_mode<synchronous>, transform_indices = @transform_2, window_bounds = array<i64: 128, 128>}, {pipeline_mode = #tpu.pipeline_mode<synchronous>, transform_indices = @transform_3, window_bounds = array<i64: 128, 128>}]} {
    %c0_i32 = arith.constant 0 : i32
    %0 = arith.cmpi eq, %arg0, %c0_i32 : i32
    %1 = arith.extui %0 : i1 to i32
    %c0_i32_0 = arith.constant 0 : i32
    %2 = arith.cmpi ne, %1, %c0_i32_0 : i32
    scf.if %2 {
      %cst_20 = arith.constant 0.000000e+00 : f32
      %21 = vector.broadcast %cst_20 : f32 to vector<128x128xf32>
      %c0_21 = arith.constant 0 : index
      %c0_22 = arith.constant 0 : index
      %22 = vector.load %arg3[%c0_21, %c0_22] : memref<128x128xf32, #tpu.memory_space<vmem>>, vector<128x128xf32>
      tpu.vector_store %arg3[%c0_21, %c0_22], %21 {strides = array<i32>} : memref<128x128xf32, #tpu.memory_space<vmem>>, vector<128x128xf32>,
      %cst_23 = arith.constant 0.000000e+00 : f32
      %23 = vector.broadcast %cst_23 : f32 to vector<128x128xf32>
      %c0_24 = arith.constant 0 : index
      %c0_25 = arith.constant 0 : index
      %24 = vector.load %arg4[%c0_24, %c0_25] : memref<128x128xf32, #tpu.memory_space<vmem>>, vector<128x128xf32>
      tpu.vector_store %arg4[%c0_24, %c0_25], %23 {strides = array<i32>} : memref<128x128xf32, #tpu.memory_space<vmem>>, vector<128x128xf32>,
    } else {
    }
    %c0 = arith.constant 0 : index
    %c0_1 = arith.constant 0 : index
    %3 = vector.load %arg1[%c0, %c0_1] : memref<64x128xf32, #tpu.memory_space<vmem>>, vector<64x128xf32>
    %c0_2 = arith.constant 0 : index
    %c0_3 = arith.constant 0 : index
    %c0_4 = arith.constant 0 : index
    %4 = vector.load %arg2[%c0_2, %c0_3, %c0_4] : memref<4x64x32xf32, #tpu.memory_space<vmem>>, vector<1x64x32xf32>
    %5 = vector.shape_cast %4 : vector<1x64x32xf32> to vector<64x32xf32>
    %c1 = arith.constant 1 : index
    %c0_5 = arith.constant 0 : index
    %c0_6 = arith.constant 0 : index
    %6 = vector.load %arg2[%c1, %c0_5, %c0_6] : memref<4x64x32xf32, #tpu.memory_space<vmem>>, vector<1x64x32xf32>
    %7 = vector.shape_cast %6 : vector<1x64x32xf32> to vector<64x32xf32>
    %c2 = arith.constant 2 : index
    %c0_7 = arith.constant 0 : index
    %c0_8 = arith.constant 0 : index
    %8 = vector.load %arg2[%c2, %c0_7, %c0_8] : memref<4x64x32xf32, #tpu.memory_space<vmem>>, vector<1x64x32xf32>
    %9 = vector.shape_cast %8 : vector<1x64x32xf32> to vector<64x32xf32>
    %c3 = arith.constant 3 : index
    %c0_9 = arith.constant 0 : index
    %c0_10 = arith.constant 0 : index
    %10 = vector.load %arg2[%c3, %c0_9, %c0_10] : memref<4x64x32xf32, #tpu.memory_space<vmem>>, vector<1x64x32xf32>
    %11 = vector.shape_cast %10 : vector<1x64x32xf32> to vector<64x32xf32>
    %12 = tpu.concatenate %5, %7, %9, %11 in 1 : vector<64x32xf32>, vector<64x32xf32>, vector<64x32xf32>, vector<64x32xf32> -> vector<64x128xf32>
    %c0_11 = arith.constant 0 : index
    %c0_12 = arith.constant 0 : index
    %13 = vector.load %arg3[%c0_11, %c0_12] : memref<128x128xf32, #tpu.memory_space<vmem>>, vector<128x128xf32>
    %cst = arith.constant dense<0.000000e+00> : vector<128x128xf32>
    %14 = tpu.matmul %3, %12, %cst {dimension_numbers = #tpu.dot_dimension_numbers<[0], [0], [1], [1], [0, 1, 1, 1], [], []>} : vector<64x128xf32>, vector<64x128xf32>, vector<128x128xf32> -> vector<128x128xf32>
    %15 = arith.addf %13, %14 : vector<128x128xf32>
    %c0_13 = arith.constant 0 : index
    %c0_14 = arith.constant 0 : index
    %16 = vector.load %arg3[%c0_13, %c0_14] : memref<128x128xf32, #tpu.memory_space<vmem>>, vector<128x128xf32>
    tpu.vector_store %arg3[%c0_13, %c0_14], %15 {strides = array<i32>} : memref<128x128xf32, #tpu.memory_space<vmem>>, vector<128x128xf32>,
    %c0_15 = arith.constant 0 : index
    %c0_16 = arith.constant 0 : index
    %17 = vector.load %arg4[%c0_15, %c0_16] : memref<128x128xf32, #tpu.memory_space<vmem>>, vector<128x128xf32>
    %cst_17 = arith.constant dense<0.000000e+00> : vector<128x128xf32>
    %18 = tpu.matmul %12, %12, %cst_17 {dimension_numbers = #tpu.dot_dimension_numbers<[0], [0], [1], [1], [0, 1, 1, 1], [], []>} : vector<64x128xf32>, vector<64x128xf32>, vector<128x128xf32> -> vector<128x128xf32>
    %19 = arith.addf %17, %18 : vector<128x128xf32>
    %c0_18 = arith.constant 0 : index
    %c0_19 = arith.constant 0 : index
    %20 = vector.load %arg4[%c0_18, %c0_19] : memref<128x128xf32, #tpu.memory_space<vmem>>, vector<128x128xf32>
    tpu.vector_store %arg4[%c0_18, %c0_19], %19 {strides = array<i32>} : memref<128x128xf32, #tpu.memory_space<vmem>>, vector<128x128xf32>,
    return
  }
  func.func @transform_0(%arg0: i32) -> (i32, i32) {
    %c0_i32 = arith.constant 0 : i32
    %c0_i32_0 = arith.constant 0 : i32
    return %arg0, %c0_i32 : i32, i32
  }
  func.func @transform_1(%arg0: i32) -> (i32, i32, i32) {
    %c0_i32 = arith.constant 0 : i32
    %c0_i32_0 = arith.constant 0 : i32
    %c0_i32_1 = arith.constant 0 : i32
    return %c0_i32, %arg0, %c0_i32_0 : i32, i32, i32
  }
  func.func @transform_2(%arg0: i32) -> (i32, i32) {
    %c0_i32 = arith.constant 0 : i32
    %c0_i32_0 = arith.constant 0 : i32
    %c0_i32_1 = arith.constant 0 : i32
    return %c0_i32, %c0_i32_0 : i32, i32
  }
  func.func @transform_3(%arg0: i32) -> (i32, i32) {
    %c0_i32 = arith.constant 0 : i32
    %c0_i32_0 = arith.constant 0 : i32
    %c0_i32_1 = arith.constant 0 : i32
    return %c0_i32, %c0_i32_0 : i32, i32
  }
}

module attributes {stable_mosaic.version = 11 : i64} {
  func.func @_output_kernel(%arg0: i32, %arg1: memref<64x128xf32, #tpu.memory_space<vmem>>, %arg2: memref<4x64x32xf32, #tpu.memory_space<vmem>>, %arg3: memref<4x32x128xf32, #tpu.memory_space<vmem>>, %arg4: memref<64x128xf32, #tpu.memory_space<vmem>>) attributes {dimension_semantics = [#tpu.dimension_semantics<parallel>], iteration_bounds = array<i64: 4>, scalar_prefetch = 0 : i64, scratch_operands = 0 : i64, tpu.core_type = #tpu.core_type<tc>, window_params = [{transform_indices = @transform_0, window_bounds = array<i64: 64, 128>}, {transform_indices = @transform_1, window_bounds = array<i64: 4, 64, 32>}, {pipeline_mode = #tpu.pipeline_mode<synchronous>, transform_indices = @transform_2, window_bounds = array<i64: 4, 32, 128>}, {transform_indices = @transform_3, window_bounds = array<i64: 64, 128>}]} {
    %c0 = arith.constant 0 : index
    %c0_0 = arith.constant 0 : index
    %0 = vector.load %arg1[%c0, %c0_0] : memref<64x128xf32, #tpu.memory_space<vmem>>, vector<64x128xf32>
    %c0_1 = arith.constant 0 : index
    %c0_2 = arith.constant 0 : index
    %c0_3 = arith.constant 0 : index
    %1 = vector.load %arg2[%c0_1, %c0_2, %c0_3] : memref<4x64x32xf32, #tpu.memory_space<vmem>>, vector<1x64x32xf32>
    %2 = vector.shape_cast %1 : vector<1x64x32xf32> to vector<64x32xf32>
    %c0_4 = arith.constant 0 : index
    %c0_5 = arith.constant 0 : index
    %c0_6 = arith.constant 0 : index
    %3 = vector.load %arg3[%c0_4, %c0_5, %c0_6] : memref<4x32x128xf32, #tpu.memory_space<vmem>>, vector<1x32x128xf32>
    %4 = vector.shape_cast %3 : vector<1x32x128xf32> to vector<32x128xf32>
    %cst = arith.constant dense<0.000000e+00> : vector<64x128xf32>
    %5 = tpu.matmul %2, %4, %cst {dimension_numbers = #tpu.dot_dimension_numbers<[1], [0], [0], [1], [0, 0, 1, 1], [], []>} : vector<64x32xf32>, vector<32x128xf32>, vector<64x128xf32> -> vector<64x128xf32>
    %6 = arith.addf %0, %5 : vector<64x128xf32>
    %c1 = arith.constant 1 : index
    %c0_7 = arith.constant 0 : index
    %c0_8 = arith.constant 0 : index
    %7 = vector.load %arg2[%c1, %c0_7, %c0_8] : memref<4x64x32xf32, #tpu.memory_space<vmem>>, vector<1x64x32xf32>
    %8 = vector.shape_cast %7 : vector<1x64x32xf32> to vector<64x32xf32>
    %c1_9 = arith.constant 1 : index
    %c0_10 = arith.constant 0 : index
    %c0_11 = arith.constant 0 : index
    %9 = vector.load %arg3[%c1_9, %c0_10, %c0_11] : memref<4x32x128xf32, #tpu.memory_space<vmem>>, vector<1x32x128xf32>
    %10 = vector.shape_cast %9 : vector<1x32x128xf32> to vector<32x128xf32>
    %cst_12 = arith.constant dense<0.000000e+00> : vector<64x128xf32>
    %11 = tpu.matmul %8, %10, %cst_12 {dimension_numbers = #tpu.dot_dimension_numbers<[1], [0], [0], [1], [0, 0, 1, 1], [], []>} : vector<64x32xf32>, vector<32x128xf32>, vector<64x128xf32> -> vector<64x128xf32>
    %12 = arith.addf %6, %11 : vector<64x128xf32>
    %c2 = arith.constant 2 : index
    %c0_13 = arith.constant 0 : index
    %c0_14 = arith.constant 0 : index
    %13 = vector.load %arg2[%c2, %c0_13, %c0_14] : memref<4x64x32xf32, #tpu.memory_space<vmem>>, vector<1x64x32xf32>
    %14 = vector.shape_cast %13 : vector<1x64x32xf32> to vector<64x32xf32>
    %c2_15 = arith.constant 2 : index
    %c0_16 = arith.constant 0 : index
    %c0_17 = arith.constant 0 : index
    %15 = vector.load %arg3[%c2_15, %c0_16, %c0_17] : memref<4x32x128xf32, #tpu.memory_space<vmem>>, vector<1x32x128xf32>
    %16 = vector.shape_cast %15 : vector<1x32x128xf32> to vector<32x128xf32>
    %cst_18 = arith.constant dense<0.000000e+00> : vector<64x128xf32>
    %17 = tpu.matmul %14, %16, %cst_18 {dimension_numbers = #tpu.dot_dimension_numbers<[1], [0], [0], [1], [0, 0, 1, 1], [], []>} : vector<64x32xf32>, vector<32x128xf32>, vector<64x128xf32> -> vector<64x128xf32>
    %18 = arith.addf %12, %17 : vector<64x128xf32>
    %c3 = arith.constant 3 : index
    %c0_19 = arith.constant 0 : index
    %c0_20 = arith.constant 0 : index
    %19 = vector.load %arg2[%c3, %c0_19, %c0_20] : memref<4x64x32xf32, #tpu.memory_space<vmem>>, vector<1x64x32xf32>
    %20 = vector.shape_cast %19 : vector<1x64x32xf32> to vector<64x32xf32>
    %c3_21 = arith.constant 3 : index
    %c0_22 = arith.constant 0 : index
    %c0_23 = arith.constant 0 : index
    %21 = vector.load %arg3[%c3_21, %c0_22, %c0_23] : memref<4x32x128xf32, #tpu.memory_space<vmem>>, vector<1x32x128xf32>
    %22 = vector.shape_cast %21 : vector<1x32x128xf32> to vector<32x128xf32>
    %cst_24 = arith.constant dense<0.000000e+00> : vector<64x128xf32>
    %23 = tpu.matmul %20, %22, %cst_24 {dimension_numbers = #tpu.dot_dimension_numbers<[1], [0], [0], [1], [0, 0, 1, 1], [], []>} : vector<64x32xf32>, vector<32x128xf32>, vector<64x128xf32> -> vector<64x128xf32>
    %24 = arith.addf %18, %23 : vector<64x128xf32>
    %c0_25 = arith.constant 0 : index
    %c0_26 = arith.constant 0 : index
    %25 = vector.load %arg4[%c0_25, %c0_26] : memref<64x128xf32, #tpu.memory_space<vmem>>, vector<64x128xf32>
    tpu.vector_store %arg4[%c0_25, %c0_26], %24 {strides = array<i32>} : memref<64x128xf32, #tpu.memory_space<vmem>>, vector<64x128xf32>,
    return
  }
  func.func @transform_0(%arg0: i32) -> (i32, i32) {
    %c0_i32 = arith.constant 0 : i32
    %c0_i32_0 = arith.constant 0 : i32
    return %arg0, %c0_i32 : i32, i32
  }
  func.func @transform_1(%arg0: i32) -> (i32, i32, i32) {
    %c0_i32 = arith.constant 0 : i32
    %c0_i32_0 = arith.constant 0 : i32
    %c0_i32_1 = arith.constant 0 : i32
    return %c0_i32, %arg0, %c0_i32_0 : i32, i32, i32
  }
  func.func @transform_2(%arg0: i32) -> (i32, i32, i32) {
    %c0_i32 = arith.constant 0 : i32
    %c0_i32_0 = arith.constant 0 : i32
    %c0_i32_1 = arith.constant 0 : i32
    %c0_i32_2 = arith.constant 0 : i32
    return %c0_i32, %c0_i32_0, %c0_i32_1 : i32, i32, i32
  }
  func.func @transform_3(%arg0: i32) -> (i32, i32) {
    %c0_i32 = arith.constant 0 : i32
    %c0_i32_0 = arith.constant 0 : i32
    return %arg0, %c0_i32 : i32, i32
  }
}

</mosaic_0001>

<llo_original>
// kernel: hypergraph_transformer_forward.2
$region0: #{hypergraph_transformer_forward.2}
  #allocation0 [shape = 'u32[]', space=smem, size = 0x4, offset = 0x4, fixed_abs, tag = 'smem constant byte address 0x4 - core index']
  #allocation1 [shape = 'u32[144,128]{1,0:T(1,128)}', space=vmem, size = 0x12000, scoped, tag = 'internal scratch']
  %s0 = inlined_call_operand.vmem [shape: f32[256,128], index: 0, kind: input, shape index: {}]
  %s1 = inlined_call_operand.vmem [shape: f32[4,256,32], index: 1, kind: input, shape index: {}]
  %s2 = inlined_call_operand.vmem [shape: f32[128,128], index: 2, kind: output, shape index: {0}]
  %s3 = inlined_call_operand.vmem [shape: f32[128,128], index: 3, kind: output, shape index: {1}]
  %4 = xla_tuple %s2, %s3
  %s5 = sld [smem:[#allocation0]]
  $region91: #{hypergraph_transformer_forward.2} parent=0
    _
  %s7 = ssub.s32 1, %s5
  %s8 = scalar_select 0, %s7, %s5
  $region1: #{hypergraph_transformer_forward.2} parent=0
    #allocation2 [shape = 'u8[262144]{0}', space=vmem, size = 0x40000, scoped, tag = 'input window, operand 1']
    loop: start=0, step=1, limit=6
    $region2: #{hypergraph_transformer_forward.2} parent=1 // loop_pre_header
      _
    $region3: #{hypergraph_transformer_forward.2} parent=1 // loop_header
      %s10 = sphi 0, %s14
      %p11 = scmp.ge.s32.totalorder %s10, 6
      %s20 = sphi 0, %s22
      %s23 = sphi 0, %s20
      %s24 = sphi 0, %s23
      %s40 = sphi 0, %s24
      %s46 = sphi 0, %s48
      %s49 = sphi 0, %s46
      %s50 = sphi 0, %s49
      %s66 = sphi 0, %s50
      %s70 = sphi 0, %s70
      %s72 = sphi 0, %s70
      %s73 = sphi 0, %s72
      %s87 = sphi 0, %s73
      %s91 = sphi 0, %s91
      %s93 = sphi 0, %s91
      %s94 = sphi 0, %s93
      %s108 = sphi 0, %s94
    $region4: #{hypergraph_transformer_forward.2} parent=1 // loop_header_branch
      %13 = sbr.rel (%p11) target = $region8
    $region5: #{hypergraph_transformer_forward.2} parent=1 // loop_body
      %s15 = ssub.s32 %s10, 1
      %s16 = ssub.s32 %s10, 2
      %s17 = sadd.s32 %s10, 1
      %s18 = ssub.s32 %s10, %s17
      %p19 = scmp.eq.s32.totalorder %s18, 0
      %s21 = sadd.s32 %s20, 1
      %s22 = scalar_select %p19, %s20, %s21
      %p25 = pneg %p19
      %p26 = scmp.eq.s32.totalorder %s10, 3
      %p27 = por %p25, %p26
      %p28 = scmp.ne.s32.totalorder %s20, %s23
      %p29 = scmp.eq.s32.totalorder %s10, 0
      %p30 = por %p28, %p29
      %p31 = scmp.ne.s32.totalorder %s20, %s23
      %p32 = scmp.eq.s32.totalorder %s15, 3
      %p33 = por %p31, %p32
      %p34 = scmp.ne.s32.totalorder %s23, %s24
      %p35 = scmp.eq.s32.totalorder %s15, 0
      %p36 = por %p34, %p35
      %p37 = scmp.ne.s32.totalorder %s23, %s24
      %p38 = scmp.eq.s32.totalorder %s16, 3
      %p39 = por %p37, %p38
      %p41 = scmp.ne.s32.totalorder %s24, %s40
      %p42 = scmp.eq.s32.totalorder %s16, 0
      %p43 = por %p41, %p42
      %s44 = ssub.s32 %s10, %s17
      %p45 = scmp.eq.s32.totalorder %s44, 0
      %s47 = sadd.s32 %s46, 1
      %s48 = scalar_select %p45, %s46, %s47
      %p51 = pneg %p45
      %p52 = scmp.eq.s32.totalorder %s10, 3
      %p53 = por %p51, %p52
      %p54 = scmp.ne.s32.totalorder %s46, %s49
      %p55 = scmp.eq.s32.totalorder %s10, 0
      %p56 = por %p54, %p55
      %p57 = scmp.ne.s32.totalorder %s46, %s49
      %p58 = scmp.eq.s32.totalorder %s15, 3
      %p59 = por %p57, %p58
      %p60 = scmp.ne.s32.totalorder %s49, %s50
      %p61 = scmp.eq.s32.totalorder %s15, 0
      %p62 = por %p60, %p61
      %p63 = scmp.ne.s32.totalorder %s49, %s50
      %p64 = scmp.eq.s32.totalorder %s16, 3
      %p65 = por %p63, %p64
      %p67 = scmp.ne.s32.totalorder %s50, %s66
      %p68 = scmp.eq.s32.totalorder %s16, 0
      %p69 = por %p67, %p68
      %s71 = sadd.s32 %s70, 1
      %p74 = scmp.eq.s32.totalorder %s10, 3
      %p75 = scmp.ne.s32.totalorder %s70, %s72
      %p76 = scmp.eq.s32.totalorder %s10, 0
      %p77 = por %p75, %p76
      %p78 = scmp.ne.s32.totalorder %s70, %s72
      %p79 = scmp.eq.s32.totalorder %s15, 3
      %p80 = por %p78, %p79
      %p81 = scmp.ne.s32.totalorder %s72, %s73
      %p82 = scmp.eq.s32.totalorder %s15, 0
      %p83 = por %p81, %p82
      %p84 = scmp.ne.s32.totalorder %s72, %s73
      %p85 = scmp.eq.s32.totalorder %s16, 3
      %p86 = por %p84, %p85
      %p88 = scmp.ne.s32.totalorder %s73, %s87
      %p89 = scmp.eq.s32.totalorder %s16, 0
      %p90 = por %p88, %p89
      %s92 = sadd.s32 %s91, 1
      %p95 = scmp.eq.s32.totalorder %s10, 3
      %p96 = scmp.ne.s32.totalorder %s91, %s93
      %p97 = scmp.eq.s32.totalorder %s10, 0
      %p98 = por %p96, %p97
      %p99 = scmp.ne.s32.totalorder %s91, %s93
      %p100 = scmp.eq.s32.totalorder %s15, 3
      %p101 = por %p99, %p100
      %p102 = scmp.ne.s32.totalorder %s93, %s94
      %p103 = scmp.eq.s32.totalorder %s15, 0
      %p104 = por %p102, %p103
      %p105 = scmp.ne.s32.totalorder %s93, %s94
      %p106 = scmp.eq.s32.totalorder %s16, 3
      %p107 = por %p105, %p106
      %p109 = scmp.ne.s32.totalorder %s94, %s108
      %p110 = scmp.eq.s32.totalorder %s16, 0
      %p111 = por %p109, %p110
      %p112 = scmp.le.s32.totalorder 1, %s10
      %p113 = scmp.lt.s32.totalorder %s10, 5
      %p114 = pnand %p112, %p113
      %p115 = pneg %p114
      // Predicated region
      $region9: #{hypergraph_transformer_forward.2} parent=5 // pred_check
        _
      $region10: #{hypergraph_transformer_forward.2} parent=5 // pred_check_branch
        %117 = sbr.rel (%p114) target = $region12
      $region11: #{hypergraph_transformer_forward.2} parent=5 // pred_region
        %s118 = ssub.s32 %s10, 1
      $region12: #{hypergraph_transformer_forward.2} parent=5 // pred_fallthru
        _
      %p119 = scmp.lt.s32.totalorder %s10, 4
      // Predicated region
      $region13: #{hypergraph_transformer_forward.2} parent=5 // pred_check
        %p120 = pneg %p119
      $region14: #{hypergraph_transformer_forward.2} parent=5 // pred_check_branch
        %122 = sbr.rel (%p120) target = $region16
      $region15: #{hypergraph_transformer_forward.2} parent=5 // pred_region
        // Predicated region
        $region17: #{hypergraph_transformer_forward.2} parent=15 // pred_check
          %p123 = pneg %p30
        $region18: #{hypergraph_transformer_forward.2} parent=15 // pred_check_branch
          %125 = sbr.rel (%p123) target = $region20
        $region19: #{hypergraph_transformer_forward.2} parent=15 // pred_region
          %s126 = smul.u32 8, %s10
          %p127 = scmp.lt.s32.totalorder %s126, 31
          %s128 = scalar_select %p127, %s126, 31
          %s129 = smul.addr %s128, 8
          %s130 = scalar_lea.vmem %s0, %s129
          %s131 = smul.u32 8, %s10
        $region20: #{hypergraph_transformer_forward.2} parent=15 // pred_fallthru
          _
        // Predicated region
        $region21: #{hypergraph_transformer_forward.2} parent=15 // pred_check
          %p132 = pneg %p56
        $region22: #{hypergraph_transformer_forward.2} parent=15 // pred_check_branch
          %134 = sbr.rel (%p132) target = $region24
        $region23: #{hypergraph_transformer_forward.2} parent=15 // pred_region
          %s135 = sand.u32 %s46, 1
          %s136 = sand.u32 %s46, 1
          %s137 = smul.addr %s136, 256
          %s138 = scalar_lea.vmem [#allocation2], %s137
          %s139 = smul.u32 8, %s10
          %s140 = smul.addr %s139, 8
          %s141 = scalar_lea.vmem %s1, %s140
          // Predicated region
          $region25: #{hypergraph_transformer_forward.2} parent=23 // pred_check
            _
          $region26: #{hypergraph_transformer_forward.2} parent=23 // pred_check_branch
            %143 = sbr.rel (0) target = $region28
          $region27: #{hypergraph_transformer_forward.2} parent=23 // pred_region
            // Predicated region
            $region29: #{hypergraph_transformer_forward.2} parent=27 // pred_check
              _
            $region30: #{hypergraph_transformer_forward.2} parent=27 // pred_check_branch
              %145 = sbr.rel (0) target = $region32
            $region31: #{hypergraph_transformer_forward.2} parent=27 // pred_region
              // Predicated region
              $region44: #{hypergraph_transformer_forward.2} parent=31 // pred_check
                _
              $region45: #{hypergraph_transformer_forward.2} parent=31 // pred_check_branch
                %222 = sbr.rel (0) target = $region47
              $region46: #{hypergraph_transformer_forward.2} parent=31 // pred_region
                loop: start=0, step=1, limit=1
                $region48: #{hypergraph_transformer_forward.2} parent=46 // loop_pre_header
                  _
                $region49: #{hypergraph_transformer_forward.2} parent=46 // loop_header
                  %s224 = sphi 0, %s228
                  %p225 = scmp.ge.s32.totalorder %s224, 1
                  %s229 = sphi %s141, %s141
                  %s230 = sphi %s138, %s138
                $region50: #{hypergraph_transformer_forward.2} parent=46 // loop_header_branch
                  %227 = sbr.rel (%p225) target = $region54
                $region51: #{hypergraph_transformer_forward.2} parent=46 // loop_body
                  %v231 = vld [vmem:[%s229] sm:$0xff]
                  %232 = vst [vmem:[%s230] sm:$0xff] %v231
                  %v233 = vld [vmem:[%s229 + $0x8] sm:$0xff]
                  %234 = vst [vmem:[%s230 + $0x8] sm:$0xff] %v233
                  %v235 = vld [vmem:[%s229 + $0x10] sm:$0xff]
                  %236 = vst [vmem:[%s230 + $0x10] sm:$0xff] %v235
                  %v237 = vld [vmem:[%s229 + $0x18] sm:$0xff]
                  %238 = vst [vmem:[%s230 + $0x18] sm:$0xff] %v237
                  %v239 = vld [vmem:[%s229 + $0x20] sm:$0xff]
                  %240 = vst [vmem:[%s230 + $0x20] sm:$0xff] %v239
                  %v241 = vld [vmem:[%s229 + $0x28] sm:$0xff]
                  %242 = vst [vmem:[%s230 + $0x28] sm:$0xff] %v241
                  %v243 = vld [vmem:[%s229 + $0x30] sm:$0xff]
                  %244 = vst [vmem:[%s230 + $0x30] sm:$0xff] %v243
                  %v245 = vld [vmem:[%s229 + $0x38] sm:$0xff]
                  %246 = vst [vmem:[%s230 + $0x38] sm:$0xff] %v245
                  %v247 = vld [vmem:[%s229 + $0x100] sm:$0xff]
                  %248 = vst [vmem:[%s230 + $0x40] sm:$0xff] %v247
                  %v249 = vld [vmem:[%s229 + $0x108] sm:$0xff]
                  %250 = vst [vmem:[%s230 + $0x48] sm:$0xff] %v249
                  %v251 = vld [vmem:[%s229 + $0x110] sm:$0xff]
                  %252 = vst [vmem:[%s230 + $0x50] sm:$0xff] %v251
                  %v253 = vld [vmem:[%s229 + $0x118] sm:$0xff]
                  %254 = vst [vmem:[%s230 + $0x58] sm:$0xff] %v253
                  %v255 = vld [vmem:[%s229 + $0x120] sm:$0xff]
                  %256 = vst [vmem:[%s230 + $0x60] sm:$0xff] %v255
                  %v257 = vld [vmem:[%s229 + $0x128] sm:$0xff]
                  %258 = vst [vmem:[%s230 + $0x68] sm:$0xff] %v257
                  %v259 = vld [vmem:[%s229 + $0x130] sm:$0xff]
                  %260 = vst [vmem:[%s230 + $0x70] sm:$0xff] %v259
                  %v261 = vld [vmem:[%s229 + $0x138] sm:$0xff]
                  %262 = vst [vmem:[%s230 + $0x78] sm:$0xff] %v261
                  %v263 = vld [vmem:[%s229 + $0x200] sm:$0xff]
                  %264 = vst [vmem:[%s230 + $0x80] sm:$0xff] %v263
                  %v265 = vld [vmem:[%s229 + $0x208] sm:$0xff]
                  %266 = vst [vmem:[%s230 + $0x88] sm:$0xff] %v265
                  %v267 = vld [vmem:[%s229 + $0x210] sm:$0xff]
                  %268 = vst [vmem:[%s230 + $0x90] sm:$0xff] %v267
                  %v269 = vld [vmem:[%s229 + $0x218] sm:$0xff]
                  %270 = vst [vmem:[%s230 + $0x98] sm:$0xff] %v269
                  %v271 = vld [vmem:[%s229 + $0x220] sm:$0xff]
                  %272 = vst [vmem:[%s230 + $0xa0] sm:$0xff] %v271
                  %v273 = vld [vmem:[%s229 + $0x228] sm:$0xff]
                  %274 = vst [vmem:[%s230 + $0xa8] sm:$0xff] %v273
                  %v275 = vld [vmem:[%s229 + $0x230] sm:$0xff]
                  %276 = vst [vmem:[%s230 + $0xb0] sm:$0xff] %v275
                  %v277 = vld [vmem:[%s229 + $0x238] sm:$0xff]
                  %278 = vst [vmem:[%s230 + $0xb8] sm:$0xff] %v277
                  %v279 = vld [vmem:[%s229 + $0x300] sm:$0xff]
                  %280 = vst [vmem:[%s230 + $0xc0] sm:$0xff] %v279
                  %v281 = vld [vmem:[%s229 + $0x308] sm:$0xff]
                  %282 = vst [vmem:[%s230 + $0xc8] sm:$0xff] %v281
                  %v283 = vld [vmem:[%s229 + $0x310] sm:$0xff]
                  %284 = vst [vmem:[%s230 + $0xd0] sm:$0xff] %v283
                  %v285 = vld [vmem:[%s229 + $0x318] sm:$0xff]
                  %286 = vst [vmem:[%s230 + $0xd8] sm:$0xff] %v285
                  %v287 = vld [vmem:[%s229 + $0x320] sm:$0xff]
                  %288 = vst [vmem:[%s230 + $0xe0] sm:$0xff] %v287
                  %v289 = vld [vmem:[%s229 + $0x328] sm:$0xff]
                  %290 = vst [vmem:[%s230 + $0xe8] sm:$0xff] %v289
                  %v291 = vld [vmem:[%s229 + $0x330] sm:$0xff]
                  %292 = vst [vmem:[%s230 + $0xf0] sm:$0xff] %v291
                  %v293 = vld [vmem:[%s229 + $0x338] sm:$0xff]
                  %294 = vst [vmem:[%s230 + $0xf8] sm:$0xff] %v293
                $region52: #{hypergraph_transformer_forward.2} parent=46 // loop_footer
                  %s228 = sadd.s32 1, %s224
                $region53: #{hypergraph_transformer_forward.2} parent=46 // loop_footer_branch
                  %223 = sbr.rel target = $region49
                $region54: #{hypergraph_transformer_forward.2} parent=46 // loop_exit
                  _
              $region47: #{hypergraph_transformer_forward.2} parent=31 // pred_fallthru
                _
              // Predicated region
              $region55: #{hypergraph_transformer_forward.2} parent=31 // pred_check
                _
              $region56: #{hypergraph_transformer_forward.2} parent=31 // pred_check_branch
                %296 = sbr.rel target = $region58
              $region57: #{hypergraph_transformer_forward.2} parent=31 // pred_region
                _
              $region58: #{hypergraph_transformer_forward.2} parent=31 // pred_fallthru
                _
            $region32: #{hypergraph_transformer_forward.2} parent=27 // pred_fallthru
              _
            // Predicated region
            $region33: #{hypergraph_transformer_forward.2} parent=27 // pred_check
              _
            $region34: #{hypergraph_transformer_forward.2} parent=27 // pred_check_branch
              %147 = sbr.rel target = $region36
            $region35: #{hypergraph_transformer_forward.2} parent=27 // pred_region
              loop: start=0, step=1, limit=1
              $region37: #{hypergraph_transformer_forward.2} parent=35 // loop_pre_header
                _
              $region38: #{hypergraph_transformer_forward.2} parent=35 // loop_header
                %s150 = sphi 0, %s154
                %p151 = scmp.ge.s32.totalorder %s150, 1
                %s155 = sphi %s141, %s141
                %s156 = sphi %s138, %s138
              $region39: #{hypergraph_transformer_forward.2} parent=35 // loop_header_branch
                %153 = sbr.rel (%p151) target = $region43
              $region40: #{hypergraph_transformer_forward.2} parent=35 // loop_body
                %v157 = vld [vmem:[%s155] sm:$0xff]
                %158 = vst [vmem:[%s156] sm:$0xff] %v157
                %v159 = vld [vmem:[%s155 + $0x8] sm:$0xff]
                %160 = vst [vmem:[%s156 + $0x8] sm:$0xff] %v159
                %v161 = vld [vmem:[%s155 + $0x10] sm:$0xff]
                %162 = vst [vmem:[%s156 + $0x10] sm:$0xff] %v161
                %v163 = vld [vmem:[%s155 + $0x18] sm:$0xff]
                %164 = vst [vmem:[%s156 + $0x18] sm:$0xff] %v163
                %v165 = vld [vmem:[%s155 + $0x20] sm:$0xff]
                %166 = vst [vmem:[%s156 + $0x20] sm:$0xff] %v165
                %v167 = vld [vmem:[%s155 + $0x28] sm:$0xff]
                %168 = vst [vmem:[%s156 + $0x28] sm:$0xff] %v167
                %v169 = vld [vmem:[%s155 + $0x30] sm:$0xff]
                %170 = vst [vmem:[%s156 + $0x30] sm:$0xff] %v169
                %v171 = vld [vmem:[%s155 + $0x38] sm:$0xff]
                %172 = vst [vmem:[%s156 + $0x38] sm:$0xff] %v171
                %v173 = vld [vmem:[%s155 + $0x100] sm:$0xff]
                %174 = vst [vmem:[%s156 + $0x40] sm:$0xff] %v173
                %v175 = vld [vmem:[%s155 + $0x108] sm:$0xff]
                %176 = vst [vmem:[%s156 + $0x48] sm:$0xff] %v175
                %v177 = vld [vmem:[%s155 + $0x110] sm:$0xff]
                %178 = vst [vmem:[%s156 + $0x50] sm:$0xff] %v177
                %v179 = vld [vmem:[%s155 + $0x118] sm:$0xff]
                %180 = vst [vmem:[%s156 + $0x58] sm:$0xff] %v179
                %v181 = vld [vmem:[%s155 + $0x120] sm:$0xff]
                %182 = vst [vmem:[%s156 + $0x60] sm:$0xff] %v181
                %v183 = vld [vmem:[%s155 + $0x128] sm:$0xff]
                %184 = vst [vmem:[%s156 + $0x68] sm:$0xff] %v183
                %v185 = vld [vmem:[%s155 + $0x130] sm:$0xff]
                %186 = vst [vmem:[%s156 + $0x70] sm:$0xff] %v185
                %v187 = vld [vmem:[%s155 + $0x138] sm:$0xff]
                %188 = vst [vmem:[%s156 + $0x78] sm:$0xff] %v187
                %v189 = vld [vmem:[%s155 + $0x200] sm:$0xff]
                %190 = vst [vmem:[%s156 + $0x80] sm:$0xff] %v189
                %v191 = vld [vmem:[%s155 + $0x208] sm:$0xff]
                %192 = vst [vmem:[%s156 + $0x88] sm:$0xff] %v191
                %v193 = vld [vmem:[%s155 + $0x210] sm:$0xff]
                %194 = vst [vmem:[%s156 + $0x90] sm:$0xff] %v193
                %v195 = vld [vmem:[%s155 + $0x218] sm:$0xff]
                %196 = vst [vmem:[%s156 + $0x98] sm:$0xff] %v195
                %v197 = vld [vmem:[%s155 + $0x220] sm:$0xff]
                %198 = vst [vmem:[%s156 + $0xa0] sm:$0xff] %v197
                %v199 = vld [vmem:[%s155 + $0x228] sm:$0xff]
                %200 = vst [vmem:[%s156 + $0xa8] sm:$0xff] %v199
                %v201 = vld [vmem:[%s155 + $0x230] sm:$0xff]
                %202 = vst [vmem:[%s156 + $0xb0] sm:$0xff] %v201
                %v203 = vld [vmem:[%s155 + $0x238] sm:$0xff]
                %204 = vst [vmem:[%s156 + $0xb8] sm:$0xff] %v203
                %v205 = vld [vmem:[%s155 + $0x300] sm:$0xff]
                %206 = vst [vmem:[%s156 + $0xc0] sm:$0xff] %v205
                %v207 = vld [vmem:[%s155 + $0x308] sm:$0xff]
                %208 = vst [vmem:[%s156 + $0xc8] sm:$0xff] %v207
                %v209 = vld [vmem:[%s155 + $0x310] sm:$0xff]
                %210 = vst [vmem:[%s156 + $0xd0] sm:$0xff] %v209
                %v211 = vld [vmem:[%s155 + $0x318] sm:$0xff]
                %212 = vst [vmem:[%s156 + $0xd8] sm:$0xff] %v211
                %v213 = vld [vmem:[%s155 + $0x320] sm:$0xff]
                %214 = vst [vmem:[%s156 + $0xe0] sm:$0xff] %v213
                %v215 = vld [vmem:[%s155 + $0x328] sm:$0xff]
                %216 = vst [vmem:[%s156 + $0xe8] sm:$0xff] %v215
                %v217 = vld [vmem:[%s155 + $0x330] sm:$0xff]
                %218 = vst [vmem:[%s156 + $0xf0] sm:$0xff] %v217
                %v219 = vld [vmem:[%s155 + $0x338] sm:$0xff]
                %220 = vst [vmem:[%s156 + $0xf8] sm:$0xff] %v219
              $region41: #{hypergraph_transformer_forward.2} parent=35 // loop_footer
                %s154 = sadd.s32 1, %s150
              $region42: #{hypergraph_transformer_forward.2} parent=35 // loop_footer_branch
                %149 = sbr.rel target = $region38
              $region43: #{hypergraph_transformer_forward.2} parent=35 // loop_exit
                _
            $region36: #{hypergraph_transformer_forward.2} parent=27 // pred_fallthru
              _
          $region28: #{hypergraph_transformer_forward.2} parent=23 // pred_fallthru
            _
          %297 = vnop
        $region24: #{hypergraph_transformer_forward.2} parent=15 // pred_fallthru
          _
      $region16: #{hypergraph_transformer_forward.2} parent=5 // pred_fallthru
        _
      %p298 = scmp.le.s32.totalorder 1, %s10
      %p299 = scmp.lt.s32.totalorder %s10, 5
      %p300 = pnand %p298, %p299
      %p301 = pneg %p300
      // Predicated region
      $region59: #{hypergraph_transformer_forward.2} parent=5 // pred_check
        _
      $region60: #{hypergraph_transformer_forward.2} parent=5 // pred_check_branch
        %303 = sbr.rel (%p300) target = $region62
      $region61: #{hypergraph_transformer_forward.2} parent=5 // pred_region
        %s304 = ssub.s32 %s10, 1
        %s305 = sand.u32 %s49, 1
        %s306 = sand.u32 %s49, 1
        %s307 = smul.addr %s306, 256
        %s308 = scalar_lea.vmem [#allocation2], %s307
        // Predicated region
        $region63: #{hypergraph_transformer_forward.2} parent=61 // pred_check
          %p309 = pneg %p62
        $region64: #{hypergraph_transformer_forward.2} parent=61 // pred_check_branch
          %311 = sbr.rel (%p309) target = $region66
        $region65: #{hypergraph_transformer_forward.2} parent=61 // pred_region
          _
        $region66: #{hypergraph_transformer_forward.2} parent=61 // pred_fallthru
          _
        %s312 = smul.u32 8, %s15
        %p313 = scmp.lt.s32.totalorder %s312, 31
        %s314 = scalar_select %p313, %s312, 31
        %s315 = smul.addr %s314, 8
        %s316 = scalar_lea.vmem %s0, %s315
        %p317 = pneg %p36
        %p318 = pneg %p33
        %s319 = sand.u32 %s49, 1
        %s320 = sand.u32 %s49, 1
        %s321 = smul.addr %s320, 256
        %s322 = scalar_lea.vmem [#allocation2], %s321
        %p323 = pneg %p62
        %p324 = pneg %p59
        %p325 = pneg %p83
        %p326 = pneg %p80
        %p327 = pneg %p104
        %p328 = pneg %p101
        %s329 = smul.u32 8, %s15
        %p330 = scmp.lt.s32.totalorder %s329, 31
        %s331 = scalar_select %p330, %s329, 31
        %s332 = smul.addr %s331, 8
        %s333 = scalar_lea.vmem %s0, %s332
        %s334 = smul.u32 8, %s15
        %s335 = smul.u32 8, %s15
        %p336 = scmp.eq.s32.totalorder %s15, 0
        // Predicated region
        $region67: #{hypergraph_transformer_forward.2} parent=61 // pred_check
          %p337 = pneg %p336
        $region68: #{hypergraph_transformer_forward.2} parent=61 // pred_check_branch
          %339 = sbr.rel (%p337) target = $region70
        $region69: #{hypergraph_transformer_forward.2} parent=61 // pred_region
          %340 = vst [vmem:[%s2] sm:$0xff] 0.0
          %341 = vst [vmem:[%s2 + $0x8] sm:$0xff] 0.0
          %342 = vst [vmem:[%s2 + $0x10] sm:$0xff] 0.0
          %343 = vst [vmem:[%s2 + $0x18] sm:$0xff] 0.0
          %344 = vst [vmem:[%s2 + $0x20] sm:$0xff] 0.0
          %345 = vst [vmem:[%s2 + $0x28] sm:$0xff] 0.0
          %346 = vst [vmem:[%s2 + $0x30] sm:$0xff] 0.0
          %347 = vst [vmem:[%s2 + $0x38] sm:$0xff] 0.0
          %348 = vst [vmem:[%s2 + $0x40] sm:$0xff] 0.0
          %349 = vst [vmem:[%s2 + $0x48] sm:$0xff] 0.0
          %350 = vst [vmem:[%s2 + $0x50] sm:$0xff] 0.0
          %351 = vst [vmem:[%s2 + $0x58] sm:$0xff] 0.0
          %352 = vst [vmem:[%s2 + $0x60] sm:$0xff] 0.0
          %353 = vst [vmem:[%s2 + $0x68] sm:$0xff] 0.0
          %354 = vst [vmem:[%s2 + $0x70] sm:$0xff] 0.0
          %355 = vst [vmem:[%s2 + $0x78] sm:$0xff] 0.0
          %356 = vst [vmem:[%s3] sm:$0xff] 0.0
          %357 = vst [vmem:[%s3 + $0x8] sm:$0xff] 0.0
          %358 = vst [vmem:[%s3 + $0x10] sm:$0xff] 0.0
          %359 = vst [vmem:[%s3 + $0x18] sm:$0xff] 0.0
          %360 = vst [vmem:[%s3 + $0x20] sm:$0xff] 0.0
          %361 = vst [vmem:[%s3 + $0x28] sm:$0xff] 0.0
          %362 = vst [vmem:[%s3 + $0x30] sm:$0xff] 0.0
          %363 = vst [vmem:[%s3 + $0x38] sm:$0xff] 0.0
          %364 = vst [vmem:[%s3 + $0x40] sm:$0xff] 0.0
          %365 = vst [vmem:[%s3 + $0x48] sm:$0xff] 0.0
          %366 = vst [vmem:[%s3 + $0x50] sm:$0xff] 0.0
          %367 = vst [vmem:[%s3 + $0x58] sm:$0xff] 0.0
          %368 = vst [vmem:[%s3 + $0x60] sm:$0xff] 0.0
          %369 = vst [vmem:[%s3 + $0x68] sm:$0xff] 0.0
          %370 = vst [vmem:[%s3 + $0x70] sm:$0xff] 0.0
          %371 = vst [vmem:[%s3 + $0x78] sm:$0xff] 0.0
        $region70: #{hypergraph_transformer_forward.2} parent=61 // pred_fallthru
          _
        %v372 = vld [vmem:[%s333] sm:$0xff]
        %v373 = vld [vmem:[%s333 + $0x8] sm:$0xff]
        %v374 = vld [vmem:[%s333 + $0x10] sm:$0xff]
        %v375 = vld [vmem:[%s333 + $0x18] sm:$0xff]
        %v376 = vld [vmem:[%s333 + $0x20] sm:$0xff]
        %v377 = vld [vmem:[%s333 + $0x28] sm:$0xff]
        %v378 = vld [vmem:[%s333 + $0x30] sm:$0xff]
        %v379 = vld [vmem:[%s333 + $0x38] sm:$0xff]
        %v380 = vld [vmem:[%s308] sm:$0xff]
        %v381 = vld [vmem:[%s308 + $0x8] sm:$0xff]
        %v382 = vld [vmem:[%s308 + $0x10] sm:$0xff]
        %v383 = vld [vmem:[%s308 + $0x18] sm:$0xff]
        %v384 = vld [vmem:[%s308 + $0x20] sm:$0xff]
        %v385 = vld [vmem:[%s308 + $0x28] sm:$0xff]
        %v386 = vld [vmem:[%s308 + $0x30] sm:$0xff]
        %v387 = vld [vmem:[%s308 + $0x38] sm:$0xff]
        %s388 = scalar_lea.vmem %s308, 64 [#allocation2]
        %v389 = vld [vmem:[%s388] sm:$0xff]
        %v390 = vld [vmem:[%s388 + $0x8] sm:$0xff]
        %v391 = vld [vmem:[%s388 + $0x10] sm:$0xff]
        %v392 = vld [vmem:[%s388 + $0x18] sm:$0xff]
        %v393 = vld [vmem:[%s388 + $0x20] sm:$0xff]
        %v394 = vld [vmem:[%s388 + $0x28] sm:$0xff]
        %v395 = vld [vmem:[%s388 + $0x30] sm:$0xff]
        %v396 = vld [vmem:[%s388 + $0x38] sm:$0xff]
        %s397 = scalar_lea.vmem %s308, 128 [#allocation2]
        %v398 = vld [vmem:[%s397] sm:$0xff]
        %v399 = vld [vmem:[%s397 + $0x8] sm:$0xff]
        %v400 = vld [vmem:[%s397 + $0x10] sm:$0xff]
        %v401 = vld [vmem:[%s397 + $0x18] sm:$0xff]
        %v402 = vld [vmem:[%s397 + $0x20] sm:$0xff]
        %v403 = vld [vmem:[%s397 + $0x28] sm:$0xff]
        %v404 = vld [vmem:[%s397 + $0x30] sm:$0xff]
        %v405 = vld [vmem:[%s397 + $0x38] sm:$0xff]
        %s406 = scalar_lea.vmem %s308, 192 [#allocation2]
        %v407 = vld [vmem:[%s406] sm:$0xff]
        %v408 = vld [vmem:[%s406 + $0x8] sm:$0xff]
        %v409 = vld [vmem:[%s406 + $0x10] sm:$0xff]
        %v410 = vld [vmem:[%s406 + $0x18] sm:$0xff]
        %v411 = vld [vmem:[%s406 + $0x20] sm:$0xff]
        %v412 = vld [vmem:[%s406 + $0x28] sm:$0xff]
        %v413 = vld [vmem:[%s406 + $0x30] sm:$0xff]
        %v414 = vld [vmem:[%s406 + $0x38] sm:$0xff]
        %423 = vrot.lane.b32.xlu0 %v389, 32
        %v424 = vpop.permute.xlu0 %423
        %425 = vrot.lane.b32.xlu0 %v390, 32
        %v426 = vpop.permute.xlu0 %425
        %427 = vrot.lane.b32.xlu0 %v391, 32
        %v428 = vpop.permute.xlu0 %427
        %429 = vrot.lane.b32.xlu0 %v392, 32
        %v430 = vpop.permute.xlu0 %429
        %431 = vrot.lane.b32.xlu0 %v393, 32
        %v432 = vpop.permute.xlu0 %431
        %433 = vrot.lane.b32.xlu0 %v394, 32
        %v434 = vpop.permute.xlu0 %433
        %435 = vrot.lane.b32.xlu0 %v395, 32
        %v436 = vpop.permute.xlu0 %435
        %437 = vrot.lane.b32.xlu0 %v396, 32
        %v438 = vpop.permute.xlu0 %437
        %455 = vrot.lane.b32.xlu0 %v398, 64
        %v456 = vpop.permute.xlu0 %455
        %457 = vrot.lane.b32.xlu0 %v399, 64
        %v458 = vpop.permute.xlu0 %457
        %459 = vrot.lane.b32.xlu0 %v400, 64
        %v460 = vpop.permute.xlu0 %459
        %461 = vrot.lane.b32.xlu0 %v401, 64
        %v462 = vpop.permute.xlu0 %461
        %463 = vrot.lane.b32.xlu0 %v402, 64
        %v464 = vpop.permute.xlu0 %463
        %465 = vrot.lane.b32.xlu0 %v403, 64
        %v466 = vpop.permute.xlu0 %465
        %467 = vrot.lane.b32.xlu0 %v404, 64
        %v468 = vpop.permute.xlu0 %467
        %469 = vrot.lane.b32.xlu0 %v405, 64
        %v470 = vpop.permute.xlu0 %469
        %487 = vrot.lane.b32.xlu0 %v407, 96
        %v488 = vpop.permute.xlu0 %487
        %489 = vrot.lane.b32.xlu0 %v408, 96
        %v490 = vpop.permute.xlu0 %489
        %491 = vrot.lane.b32.xlu0 %v409, 96
        %v492 = vpop.permute.xlu0 %491
        %493 = vrot.lane.b32.xlu0 %v410, 96
        %v494 = vpop.permute.xlu0 %493
        %495 = vrot.lane.b32.xlu0 %v411, 96
        %v496 = vpop.permute.xlu0 %495
        %497 = vrot.lane.b32.xlu0 %v412, 96
        %v498 = vpop.permute.xlu0 %497
        %499 = vrot.lane.b32.xlu0 %v413, 96
        %v500 = vpop.permute.xlu0 %499
        %501 = vrot.lane.b32.xlu0 %v414, 96
        %v502 = vpop.permute.xlu0 %501
        %vm511 = vcmask 261120
        %v512 = vsel %vm511, %v380, %v424
        %v513 = vsel %vm511, %v381, %v426
        %v514 = vsel %vm511, %v382, %v428
        %v515 = vsel %vm511, %v383, %v430
        %v516 = vsel %vm511, %v384, %v432
        %v517 = vsel %vm511, %v385, %v434
        %v518 = vsel %vm511, %v386, %v436
        %v519 = vsel %vm511, %v387, %v438
        %vm520 = vcmask 523264
        %v521 = vsel %vm520, %v512, %v456
        %v522 = vsel %vm520, %v513, %v458
        %v523 = vsel %vm520, %v514, %v460
        %v524 = vsel %vm520, %v515, %v462
        %v525 = vsel %vm520, %v516, %v464
        %v526 = vsel %vm520, %v517, %v466
        %v527 = vsel %vm520, %v518, %v468
        %v528 = vsel %vm520, %v519, %v470
        %vm529 = vcmask 785408
        %v530 = vsel %vm529, %v521, %v488
        %v531 = vsel %vm529, %v522, %v490
        %v532 = vsel %vm529, %v523, %v492
        %v533 = vsel %vm529, %v524, %v494
        %v534 = vsel %vm529, %v525, %v496
        %v535 = vsel %vm529, %v526, %v498
        %v536 = vsel %vm529, %v527, %v500
        %v537 = vsel %vm529, %v528, %v502
        %v538 = vld [vmem:[%s2] sm:$0xff]
        %v539 = vld [vmem:[%s2 + $0x8] sm:$0xff]
        %v540 = vld [vmem:[%s2 + $0x10] sm:$0xff]
        %v541 = vld [vmem:[%s2 + $0x18] sm:$0xff]
        %v542 = vld [vmem:[%s2 + $0x20] sm:$0xff]
        %v543 = vld [vmem:[%s2 + $0x28] sm:$0xff]
        %v544 = vld [vmem:[%s2 + $0x30] sm:$0xff]
        %v545 = vld [vmem:[%s2 + $0x38] sm:$0xff]
        %v546 = vld [vmem:[%s2 + $0x40] sm:$0xff]
        %v547 = vld [vmem:[%s2 + $0x48] sm:$0xff]
        %v548 = vld [vmem:[%s2 + $0x50] sm:$0xff]
        %v549 = vld [vmem:[%s2 + $0x58] sm:$0xff]
        %v550 = vld [vmem:[%s2 + $0x60] sm:$0xff]
        %v551 = vld [vmem:[%s2 + $0x68] sm:$0xff]
        %v552 = vld [vmem:[%s2 + $0x70] sm:$0xff]
        %v553 = vld [vmem:[%s2 + $0x78] sm:$0xff]
        %554 = vxpose.xlu0.b32.start [1/16] %v372, 128
        %555 = vxpose.xlu0.b32.cont [2/16] %v373, 128
        %556 = vxpose.xlu0.b32.cont [3/16] %v374, 128
        %557 = vxpose.xlu0.b32.cont [4/16] %v375, 128
        %558 = vxpose.xlu0.b32.cont [5/16] %v376, 128
        %559 = vxpose.xlu0.b32.cont [6/16] %v377, 128
        %560 = vxpose.xlu0.b32.cont [7/16] %v378, 128
        %561 = vxpose.xlu0.b32.cont [8/16] %v379, 128
        %562 = vxpose.xlu0.b32.cont [9/16] 0.0, 128
        %563 = vxpose.xlu0.b32.cont [10/16] 0.0, 128
        %564 = vxpose.xlu0.b32.cont [11/16] 0.0, 128
        %565 = vxpose.xlu0.b32.cont [12/16] 0.0, 128
        %566 = vxpose.xlu0.b32.cont [13/16] 0.0, 128
        %567 = vxpose.xlu0.b32.cont [14/16] 0.0, 128
        %568 = vxpose.xlu0.b32.cont [15/16] 0.0, 128
        %569 = vxpose.xlu0.b32.end [16/16] 0.0, 128
        %v570 = vpop.trf.xlu0
        %v571 = vpop.trf.xlu0
        %v572 = vpop.trf.xlu0
        %v573 = vpop.trf.xlu0
        %v574 = vpop.trf.xlu0
        %v575 = vpop.trf.xlu0
        %v576 = vpop.trf.xlu0
        %v577 = vpop.trf.xlu0
        %v578 = vpop.trf.xlu0
        %v579 = vpop.trf.xlu0
        %v580 = vpop.trf.xlu0
        %v581 = vpop.trf.xlu0
        %v582 = vpop.trf.xlu0
        %v583 = vpop.trf.xlu0
        %v584 = vpop.trf.xlu0
        %v585 = vpop.trf.xlu0
        %v587 = vsel %vm520, %v570, 0
        %v590 = vsel %vm520, %v571, 0
        %v593 = vsel %vm520, %v572, 0
        %v596 = vsel %vm520, %v573, 0
        %v599 = vsel %vm520, %v574, 0
        %v602 = vsel %vm520, %v575, 0
        %v605 = vsel %vm520, %v576, 0
        %v608 = vsel %vm520, %v577, 0
        %v611 = vsel %vm520, %v578, 0
        %v614 = vsel %vm520, %v579, 0
        %v617 = vsel %vm520, %v580, 0
        %v620 = vsel %vm520, %v581, 0
        %v623 = vsel %vm520, %v582, 0
        %v626 = vsel %vm520, %v583, 0
        %v629 = vsel %vm520, %v584, 0
        %v632 = vsel %vm520, %v585, 0
        %634 = vmatprep.subr.mxu0 0.0
        %635 = vmatpush1.msra.mxu0 %v530
        %636 = vmatprep.subr.mxu0 0.0
        %637 = vmatpush1.msra.mxu0 %v531
        %638 = vmatprep.subr.mxu0 0.0
        %639 = vmatpush1.msra.mxu0 %v532
        %640 = vmatprep.subr.mxu0 0.0
        %641 = vmatpush1.msra.mxu0 %v533
        %642 = vmatprep.subr.mxu0 0.0
        %643 = vmatpush1.msra.mxu0 %v534
        %644 = vmatprep.subr.mxu0 0.0
        %645 = vmatpush1.msra.mxu0 %v535
        %646 = vmatprep.subr.mxu0 0.0
        %647 = vmatpush1.msra.mxu0 %v536
        %648 = vmatprep.subr.mxu0 0.0
        %649 = vmatpush1.msra.mxu0 %v537
        %650 = vmatprep.subr.mxu0 0.0
        %651 = vmatpush1.msra.mxu0 0.0
        %652 = vmatprep.subr.mxu0 0.0
        %653 = vmatpush1.msra.mxu0 0.0
        %654 = vmatprep.subr.mxu0 0.0
        %655 = vmatpush1.msra.mxu0 0.0
        %656 = vmatprep.subr.mxu0 0.0
        %657 = vmatpush1.msra.mxu0 0.0
        %658 = vmatprep.subr.mxu0 0.0
        %659 = vmatpush1.msra.mxu0 0.0
        %660 = vmatprep.subr.mxu0 0.0
        %661 = vmatpush1.msra.mxu0 0.0
        %662 = vmatprep.subr.mxu0 0.0
        %663 = vmatpush1.msra.mxu0 0.0
        %664 = vmatprep.subr.mxu0 0.0
        %665 = vmatpush1.msra.mxu0 0.0
        %666 = vmatprep.subr.mxu0 0.0
        %667 = vmatpush1.msra.mxu0 0.0
        %668 = vmatprep.subr.mxu0 0.0
        %669 = vmatpush1.msra.mxu0 0.0
        %670 = vmatprep.subr.mxu0 0.0
        %671 = vmatpush1.msra.mxu0 0.0
        %672 = vmatprep.subr.mxu0 0.0
        %673 = vmatpush1.msra.mxu0 0.0
        %674 = vmatprep.subr.mxu0 0.0
        %675 = vmatpush1.msra.mxu0 0.0
        %676 = vmatprep.subr.mxu0 0.0
        %677 = vmatpush1.msra.mxu0 0.0
        %678 = vmatprep.subr.mxu0 0.0
        %679 = vmatpush1.msra.mxu0 0.0
        %680 = vmatprep.subr.mxu0 0.0
        %681 = vmatpush1.msra.mxu0 0.0
        %682 = vmatprep.subr.mxu0 0.0
        %683 = vmatpush1.msra.mxu0 0.0
        %684 = vmatprep.subr.mxu0 0.0
        %685 = vmatpush1.msra.mxu0 0.0
        %686 = vmatprep.subr.mxu0 0.0
        %687 = vmatpush1.msra.mxu0 0.0
        %688 = vmatprep.subr.mxu0 0.0
        %689 = vmatpush1.msra.mxu0 0.0
        %690 = vmatprep.subr.mxu0 0.0
        %691 = vmatpush1.msra.mxu0 0.0
        %692 = vmatprep.subr.mxu0 0.0
        %693 = vmatpush1.msra.mxu0 0.0
        %694 = vmatprep.subr.mxu0 0.0
        %695 = vmatpush1.msra.mxu0 0.0
        %696 = vmatprep.subr.mxu0 0.0
        %697 = vmatpush1.msra.mxu0 0.0
        %698 = vmatprep.mubr.f32.mxu0 0.0
        %699 = vmatmul.mubr.f32.gmra.mrb[0].mxu0 %v587
        %v700 = vpop.f32.mrb[0].mxu0
        %v701 = vadd.f32 0.0, %v700
        %v702 = vpop.f32.mrb[0].mxu0
        %703 = vmatprep.mubr.f32.mxu0 0.0
        %704 = vmatmul.mubr.f32.gmra.mrb[0].mxu0 %v590
        %v705 = vpop.f32.mrb[0].mxu0
        %v706 = vadd.f32 0.0, %v705
        %v707 = vpop.f32.mrb[0].mxu0
        %708 = vmatprep.mubr.f32.mxu0 0.0
        %709 = vmatmul.mubr.f32.gmra.mrb[0].mxu0 %v593
        %v710 = vpop.f32.mrb[0].mxu0
        %v711 = vadd.f32 0.0, %v710
        %v712 = vpop.f32.mrb[0].mxu0
        %713 = vmatprep.mubr.f32.mxu0 0.0
        %714 = vmatmul.mubr.f32.gmra.mrb[0].mxu0 %v596
        %v715 = vpop.f32.mrb[0].mxu0
        %v716 = vadd.f32 0.0, %v715
        %v717 = vpop.f32.mrb[0].mxu0
        %718 = vmatprep.mubr.f32.mxu0 0.0
        %719 = vmatmul.mubr.f32.gmra.mrb[0].mxu0 %v599
        %v720 = vpop.f32.mrb[0].mxu0
        %v721 = vadd.f32 0.0, %v720
        %v722 = vpop.f32.mrb[0].mxu0
        %723 = vmatprep.mubr.f32.mxu0 0.0
        %724 = vmatmul.mubr.f32.gmra.mrb[0].mxu0 %v602
        %v725 = vpop.f32.mrb[0].mxu0
        %v726 = vadd.f32 0.0, %v725
        %v727 = vpop.f32.mrb[0].mxu0
        %728 = vmatprep.mubr.f32.mxu0 0.0
        %729 = vmatmul.mubr.f32.gmra.mrb[0].mxu0 %v605
        %v730 = vpop.f32.mrb[0].mxu0
        %v731 = vadd.f32 0.0, %v730
        %v732 = vpop.f32.mrb[0].mxu0
        %733 = vmatprep.mubr.f32.mxu0 0.0
        %734 = vmatmul.mubr.f32.gmra.mrb[0].mxu0 %v608
        %v735 = vpop.f32.mrb[0].mxu0
        %v736 = vadd.f32 0.0, %v735
        %v737 = vpop.f32.mrb[0].mxu0
        %738 = vmatprep.mubr.f32.mxu0 0.0
        %739 = vmatmul.mubr.f32.gmra.mrb[0].mxu0 %v611
        %v740 = vpop.f32.mrb[0].mxu0
        %v741 = vadd.f32 0.0, %v740
        %v742 = vpop.f32.mrb[0].mxu0
        %743 = vmatprep.mubr.f32.mxu0 0.0
        %744 = vmatmul.mubr.f32.gmra.mrb[0].mxu0 %v614
        %v745 = vpop.f32.mrb[0].mxu0
        %v746 = vadd.f32 0.0, %v745
        %v747 = vpop.f32.mrb[0].mxu0
        %748 = vmatprep.mubr.f32.mxu0 0.0
        %749 = vmatmul.mubr.f32.gmra.mrb[0].mxu0 %v617
        %v750 = vpop.f32.mrb[0].mxu0
        %v751 = vadd.f32 0.0, %v750
        %v752 = vpop.f32.mrb[0].mxu0
        %753 = vmatprep.mubr.f32.mxu0 0.0
        %754 = vmatmul.mubr.f32.gmra.mrb[0].mxu0 %v620
        %v755 = vpop.f32.mrb[0].mxu0
        %v756 = vadd.f32 0.0, %v755
        %v757 = vpop.f32.mrb[0].mxu0
        %758 = vmatprep.mubr.f32.mxu0 0.0
        %759 = vmatmul.mubr.f32.gmra.mrb[0].mxu0 %v623
        %v760 = vpop.f32.mrb[0].mxu0
        %v761 = vadd.f32 0.0, %v760
        %v762 = vpop.f32.mrb[0].mxu0
        %763 = vmatprep.mubr.f32.mxu0 0.0
        %764 = vmatmul.mubr.f32.gmra.mrb[0].mxu0 %v626
        %v765 = vpop.f32.mrb[0].mxu0
        %v766 = vadd.f32 0.0, %v765
        %v767 = vpop.f32.mrb[0].mxu0
        %768 = vmatprep.mubr.f32.mxu0 0.0
        %769 = vmatmul.mubr.f32.gmra.mrb[0].mxu0 %v629
        %v770 = vpop.f32.mrb[0].mxu0
        %v771 = vadd.f32 0.0, %v770
        %v772 = vpop.f32.mrb[0].mxu0
        %773 = vmatprep.mubr.f32.mxu0 0.0
        %774 = vmatmul.mubr.f32.gmra.mrb[0].mxu0 %v632
        %v775 = vpop.f32.mrb[0].mxu0
        %v776 = vadd.f32 0.0, %v775
        %v777 = vpop.f32.mrb[0].mxu0
        %778 = vdwg.mxu0
        %v779 = vadd.f32 %v538, %v701
        %v780 = vadd.f32 %v539, %v706
        %v781 = vadd.f32 %v540, %v711
        %v782 = vadd.f32 %v541, %v716
        %v783 = vadd.f32 %v542, %v721
        %v784 = vadd.f32 %v543, %v726
        %v785 = vadd.f32 %v544, %v731
        %v786 = vadd.f32 %v545, %v736
        %v787 = vadd.f32 %v546, %v741
        %v788 = vadd.f32 %v547, %v746
        %v789 = vadd.f32 %v548, %v751
        %v790 = vadd.f32 %v549, %v756
        %v791 = vadd.f32 %v550, %v761
        %v792 = vadd.f32 %v551, %v766
        %v793 = vadd.f32 %v552, %v771
        %v794 = vadd.f32 %v553, %v776
        %795 = vst [vmem:[%s2] sm:$0xff] %v779
        %796 = vst [vmem:[%s2 + $0x8] sm:$0xff] %v780
        %797 = vst [vmem:[%s2 + $0x10] sm:$0xff] %v781
        %798 = vst [vmem:[%s2 + $0x18] sm:$0xff] %v782
        %799 = vst [vmem:[%s2 + $0x20] sm:$0xff] %v783
        %800 = vst [vmem:[%s2 + $0x28] sm:$0xff] %v784
        %801 = vst [vmem:[%s2 + $0x30] sm:$0xff] %v785
        %802 = vst [vmem:[%s2 + $0x38] sm:$0xff] %v786
        %803 = vst [vmem:[%s2 + $0x40] sm:$0xff] %v787
        %804 = vst [vmem:[%s2 + $0x48] sm:$0xff] %v788
        %805 = vst [vmem:[%s2 + $0x50] sm:$0xff] %v789
        %806 = vst [vmem:[%s2 + $0x58] sm:$0xff] %v790
        %807 = vst [vmem:[%s2 + $0x60] sm:$0xff] %v791
        %808 = vst [vmem:[%s2 + $0x68] sm:$0xff] %v792
        %809 = vst [vmem:[%s2 + $0x70] sm:$0xff] %v793
        %810 = vst [vmem:[%s2 + $0x78] sm:$0xff] %v794
        %v811 = vld [vmem:[%s3] sm:$0xff]
        %v812 = vld [vmem:[%s3 + $0x8] sm:$0xff]
        %v813 = vld [vmem:[%s3 + $0x10] sm:$0xff]
        %v814 = vld [vmem:[%s3 + $0x18] sm:$0xff]
        %v815 = vld [vmem:[%s3 + $0x20] sm:$0xff]
        %v816 = vld [vmem:[%s3 + $0x28] sm:$0xff]
        %v817 = vld [vmem:[%s3 + $0x30] sm:$0xff]
        %v818 = vld [vmem:[%s3 + $0x38] sm:$0xff]
        %v819 = vld [vmem:[%s3 + $0x40] sm:$0xff]
        %v820 = vld [vmem:[%s3 + $0x48] sm:$0xff]
        %v821 = vld [vmem:[%s3 + $0x50] sm:$0xff]
        %v822 = vld [vmem:[%s3 + $0x58] sm:$0xff]
        %v823 = vld [vmem:[%s3 + $0x60] sm:$0xff]
        %v824 = vld [vmem:[%s3 + $0x68] sm:$0xff]
        %v825 = vld [vmem:[%s3 + $0x70] sm:$0xff]
        %v826 = vld [vmem:[%s3 + $0x78] sm:$0xff]
        %827 = vxpose.xlu0.b32.start [1/16] %v530, 128
        %828 = vxpose.xlu0.b32.cont [2/16] %v531, 128
        %829 = vxpose.xlu0.b32.cont [3/16] %v532, 128
        %830 = vxpose.xlu0.b32.cont [4/16] %v533, 128
        %831 = vxpose.xlu0.b32.cont [5/16] %v534, 128
        %832 = vxpose.xlu0.b32.cont [6/16] %v535, 128
        %833 = vxpose.xlu0.b32.cont [7/16] %v536, 128
        %834 = vxpose.xlu0.b32.cont [8/16] %v537, 128
        %835 = vxpose.xlu0.b32.cont [9/16] 0.0, 128
        %836 = vxpose.xlu0.b32.cont [10/16] 0.0, 128
        %837 = vxpose.xlu0.b32.cont [11/16] 0.0, 128
        %838 = vxpose.xlu0.b32.cont [12/16] 0.0, 128
        %839 = vxpose.xlu0.b32.cont [13/16] 0.0, 128
        %840 = vxpose.xlu0.b32.cont [14/16] 0.0, 128
        %841 = vxpose.xlu0.b32.cont [15/16] 0.0, 128
        %842 = vxpose.xlu0.b32.end [16/16] 0.0, 128
        %v843 = vpop.trf.xlu0
        %v844 = vpop.trf.xlu0
        %v845 = vpop.trf.xlu0
        %v846 = vpop.trf.xlu0
        %v847 = vpop.trf.xlu0
        %v848 = vpop.trf.xlu0
        %v849 = vpop.trf.xlu0
        %v850 = vpop.trf.xlu0
        %v851 = vpop.trf.xlu0
        %v852 = vpop.trf.xlu0
        %v853 = vpop.trf.xlu0
        %v854 = vpop.trf.xlu0
        %v855 = vpop.trf.xlu0
        %v856 = vpop.trf.xlu0
        %v857 = vpop.trf.xlu0
        %v858 = vpop.trf.xlu0
        %v860 = vsel %vm520, %v843, 0
        %v863 = vsel %vm520, %v844, 0
        %v866 = vsel %vm520, %v845, 0
        %v869 = vsel %vm520, %v846, 0
        %v872 = vsel %vm520, %v847, 0
        %v875 = vsel %vm520, %v848, 0
        %v878 = vsel %vm520, %v849, 0
        %v881 = vsel %vm520, %v850, 0
        %v884 = vsel %vm520, %v851, 0
        %v887 = vsel %vm520, %v852, 0
        %v890 = vsel %vm520, %v853, 0
        %v893 = vsel %vm520, %v854, 0
        %v896 = vsel %vm520, %v855, 0
        %v899 = vsel %vm520, %v856, 0
        %v902 = vsel %vm520, %v857, 0
        %v905 = vsel %vm520, %v858, 0
        %907 = vmatprep.subr.mxu0 0.0
        %908 = vmatpush1.msra.mxu0 %v530
        %909 = vmatprep.subr.mxu0 0.0
        %910 = vmatpush1.msra.mxu0 %v531
        %911 = vmatprep.subr.mxu0 0.0
        %912 = vmatpush1.msra.mxu0 %v532
        %913 = vmatprep.subr.mxu0 0.0
        %914 = vmatpush1.msra.mxu0 %v533
        %915 = vmatprep.subr.mxu0 0.0
        %916 = vmatpush1.msra.mxu0 %v534
        %917 = vmatprep.subr.mxu0 0.0
        %918 = vmatpush1.msra.mxu0 %v535
        %919 = vmatprep.subr.mxu0 0.0
        %920 = vmatpush1.msra.mxu0 %v536
        %921 = vmatprep.subr.mxu0 0.0
        %922 = vmatpush1.msra.mxu0 %v537
        %923 = vmatprep.subr.mxu0 0.0
        %924 = vmatpush1.msra.mxu0 0.0
        %925 = vmatprep.subr.mxu0 0.0
        %926 = vmatpush1.msra.mxu0 0.0
        %927 = vmatprep.subr.mxu0 0.0
        %928 = vmatpush1.msra.mxu0 0.0
        %929 = vmatprep.subr.mxu0 0.0
        %930 = vmatpush1.msra.mxu0 0.0
        %931 = vmatprep.subr.mxu0 0.0
        %932 = vmatpush1.msra.mxu0 0.0
        %933 = vmatprep.subr.mxu0 0.0
        %934 = vmatpush1.msra.mxu0 0.0
        %935 = vmatprep.subr.mxu0 0.0
        %936 = vmatpush1.msra.mxu0 0.0
        %937 = vmatprep.subr.mxu0 0.0
        %938 = vmatpush1.msra.mxu0 0.0
        %939 = vmatprep.subr.mxu0 0.0
        %940 = vmatpush1.msra.mxu0 0.0
        %941 = vmatprep.subr.mxu0 0.0
        %942 = vmatpush1.msra.mxu0 0.0
        %943 = vmatprep.subr.mxu0 0.0
        %944 = vmatpush1.msra.mxu0 0.0
        %945 = vmatprep.subr.mxu0 0.0
        %946 = vmatpush1.msra.mxu0 0.0
        %947 = vmatprep.subr.mxu0 0.0
        %948 = vmatpush1.msra.mxu0 0.0
        %949 = vmatprep.subr.mxu0 0.0
        %950 = vmatpush1.msra.mxu0 0.0
        %951 = vmatprep.subr.mxu0 0.0
        %952 = vmatpush1.msra.mxu0 0.0
        %953 = vmatprep.subr.mxu0 0.0
        %954 = vmatpush1.msra.mxu0 0.0
        %955 = vmatprep.subr.mxu0 0.0
        %956 = vmatpush1.msra.mxu0 0.0
        %957 = vmatprep.subr.mxu0 0.0
        %958 = vmatpush1.msra.mxu0 0.0
        %959 = vmatprep.subr.mxu0 0.0
        %960 = vmatpush1.msra.mxu0 0.0
        %961 = vmatprep.subr.mxu0 0.0
        %962 = vmatpush1.msra.mxu0 0.0
        %963 = vmatprep.subr.mxu0 0.0
        %964 = vmatpush1.msra.mxu0 0.0
        %965 = vmatprep.subr.mxu0 0.0
        %966 = vmatpush1.msra.mxu0 0.0
        %967 = vmatprep.subr.mxu0 0.0
        %968 = vmatpush1.msra.mxu0 0.0
        %969 = vmatprep.subr.mxu0 0.0
        %970 = vmatpush1.msra.mxu0 0.0
        %971 = vmatprep.mubr.f32.mxu0 0.0
        %972 = vmatmul.mubr.f32.gmra.mrb[0].mxu0 %v860
        %v973 = vpop.f32.mrb[0].mxu0
        %v974 = vadd.f32 0.0, %v973
        %v975 = vpop.f32.mrb[0].mxu0
        %976 = vmatprep.mubr.f32.mxu0 0.0
        %977 = vmatmul.mubr.f32.gmra.mrb[0].mxu0 %v863
        %v978 = vpop.f32.mrb[0].mxu0
        %v979 = vadd.f32 0.0, %v978
        %v980 = vpop.f32.mrb[0].mxu0
        %981 = vmatprep.mubr.f32.mxu0 0.0
        %982 = vmatmul.mubr.f32.gmra.mrb[0].mxu0 %v866
        %v983 = vpop.f32.mrb[0].mxu0
        %v984 = vadd.f32 0.0, %v983
        %v985 = vpop.f32.mrb[0].mxu0
        %986 = vmatprep.mubr.f32.mxu0 0.0
        %987 = vmatmul.mubr.f32.gmra.mrb[0].mxu0 %v869
        %v988 = vpop.f32.mrb[0].mxu0
        %v989 = vadd.f32 0.0, %v988
        %v990 = vpop.f32.mrb[0].mxu0
        %991 = vmatprep.mubr.f32.mxu0 0.0
        %992 = vmatmul.mubr.f32.gmra.mrb[0].mxu0 %v872
        %v993 = vpop.f32.mrb[0].mxu0
        %v994 = vadd.f32 0.0, %v993
        %v995 = vpop.f32.mrb[0].mxu0
        %996 = vmatprep.mubr.f32.mxu0 0.0
        %997 = vmatmul.mubr.f32.gmra.mrb[0].mxu0 %v875
        %v998 = vpop.f32.mrb[0].mxu0
        %v999 = vadd.f32 0.0, %v998
        %v1000 = vpop.f32.mrb[0].mxu0
        %1001 = vmatprep.mubr.f32.mxu0 0.0
        %1002 = vmatmul.mubr.f32.gmra.mrb[0].mxu0 %v878
        %v1003 = vpop.f32.mrb[0].mxu0
        %v1004 = vadd.f32 0.0, %v1003
        %v1005 = vpop.f32.mrb[0].mxu0
        %1006 = vmatprep.mubr.f32.mxu0 0.0
        %1007 = vmatmul.mubr.f32.gmra.mrb[0].mxu0 %v881
        %v1008 = vpop.f32.mrb[0].mxu0
        %v1009 = vadd.f32 0.0, %v1008
        %v1010 = vpop.f32.mrb[0].mxu0
        %1011 = vmatprep.mubr.f32.mxu0 0.0
        %1012 = vmatmul.mubr.f32.gmra.mrb[0].mxu0 %v884
        %v1013 = vpop.f32.mrb[0].mxu0
        %v1014 = vadd.f32 0.0, %v1013
        %v1015 = vpop.f32.mrb[0].mxu0
        %1016 = vmatprep.mubr.f32.mxu0 0.0
        %1017 = vmatmul.mubr.f32.gmra.mrb[0].mxu0 %v887
        %v1018 = vpop.f32.mrb[0].mxu0
        %v1019 = vadd.f32 0.0, %v1018
        %v1020 = vpop.f32.mrb[0].mxu0
        %1021 = vmatprep.mubr.f32.mxu0 0.0
        %1022 = vmatmul.mubr.f32.gmra.mrb[0].mxu0 %v890
        %v1023 = vpop.f32.mrb[0].mxu0
        %v1024 = vadd.f32 0.0, %v1023
        %v1025 = vpop.f32.mrb[0].mxu0
        %1026 = vmatprep.mubr.f32.mxu0 0.0
        %1027 = vmatmul.mubr.f32.gmra.mrb[0].mxu0 %v893
        %v1028 = vpop.f32.mrb[0].mxu0
        %v1029 = vadd.f32 0.0, %v1028
        %v1030 = vpop.f32.mrb[0].mxu0
        %1031 = vmatprep.mubr.f32.mxu0 0.0
        %1032 = vmatmul.mubr.f32.gmra.mrb[0].mxu0 %v896
        %v1033 = vpop.f32.mrb[0].mxu0
        %v1034 = vadd.f32 0.0, %v1033
        %v1035 = vpop.f32.mrb[0].mxu0
        %1036 = vmatprep.mubr.f32.mxu0 0.0
        %1037 = vmatmul.mubr.f32.gmra.mrb[0].mxu0 %v899
        %v1038 = vpop.f32.mrb[0].mxu0
        %v1039 = vadd.f32 0.0, %v1038
        %v1040 = vpop.f32.mrb[0].mxu0
        %1041 = vmatprep.mubr.f32.mxu0 0.0
        %1042 = vmatmul.mubr.f32.gmra.mrb[0].mxu0 %v902
        %v1043 = vpop.f32.mrb[0].mxu0
        %v1044 = vadd.f32 0.0, %v1043
        %v1045 = vpop.f32.mrb[0].mxu0
        %1046 = vmatprep.mubr.f32.mxu0 0.0
        %1047 = vmatmul.mubr.f32.gmra.mrb[0].mxu0 %v905
        %v1048 = vpop.f32.mrb[0].mxu0
        %v1049 = vadd.f32 0.0, %v1048
        %v1050 = vpop.f32.mrb[0].mxu0
        %1051 = vdwg.mxu0
        %v1052 = vadd.f32 %v811, %v974
        %v1053 = vadd.f32 %v812, %v979
        %v1054 = vadd.f32 %v813, %v984
        %v1055 = vadd.f32 %v814, %v989
        %v1056 = vadd.f32 %v815, %v994
        %v1057 = vadd.f32 %v816, %v999
        %v1058 = vadd.f32 %v817, %v1004
        %v1059 = vadd.f32 %v818, %v1009
        %v1060 = vadd.f32 %v819, %v1014
        %v1061 = vadd.f32 %v820, %v1019
        %v1062 = vadd.f32 %v821, %v1024
        %v1063 = vadd.f32 %v822, %v1029
        %v1064 = vadd.f32 %v823, %v1034
        %v1065 = vadd.f32 %v824, %v1039
        %v1066 = vadd.f32 %v825, %v1044
        %v1067 = vadd.f32 %v826, %v1049
        %1068 = vst [vmem:[%s3] sm:$0xff] %v1052
        %1069 = vst [vmem:[%s3 + $0x8] sm:$0xff] %v1053
        %1070 = vst [vmem:[%s3 + $0x10] sm:$0xff] %v1054
        %1071 = vst [vmem:[%s3 + $0x18] sm:$0xff] %v1055
        %1072 = vst [vmem:[%s3 + $0x20] sm:$0xff] %v1056
        %1073 = vst [vmem:[%s3 + $0x28] sm:$0xff] %v1057
        %1074 = vst [vmem:[%s3 + $0x30] sm:$0xff] %v1058
        %1075 = vst [vmem:[%s3 + $0x38] sm:$0xff] %v1059
        %1076 = vst [vmem:[%s3 + $0x40] sm:$0xff] %v1060
        %1077 = vst [vmem:[%s3 + $0x48] sm:$0xff] %v1061
        %1078 = vst [vmem:[%s3 + $0x50] sm:$0xff] %v1062
        %1079 = vst [vmem:[%s3 + $0x58] sm:$0xff] %v1063
        %1080 = vst [vmem:[%s3 + $0x60] sm:$0xff] %v1064
        %1081 = vst [vmem:[%s3 + $0x68] sm:$0xff] %v1065
        %1082 = vst [vmem:[%s3 + $0x70] sm:$0xff] %v1066
        %1083 = vst [vmem:[%s3 + $0x78] sm:$0xff] %v1067
        // Predicated region
        $region71: #{hypergraph_transformer_forward.2} parent=61 // pred_check
          %p1084 = pneg %p80
        $region72: #{hypergraph_transformer_forward.2} parent=61 // pred_check_branch
          %1086 = sbr.rel (%p1084) target = $region74
        $region73: #{hypergraph_transformer_forward.2} parent=61 // pred_region
          _
        $region74: #{hypergraph_transformer_forward.2} parent=61 // pred_fallthru
          _
        // Predicated region
        $region75: #{hypergraph_transformer_forward.2} parent=61 // pred_check
          %p1087 = pneg %p101
        $region76: #{hypergraph_transformer_forward.2} parent=61 // pred_check_branch
          %1089 = sbr.rel (%p1087) target = $region78
        $region77: #{hypergraph_transformer_forward.2} parent=61 // pred_region
          _
        $region78: #{hypergraph_transformer_forward.2} parent=61 // pred_fallthru
          _
        // Predicated region
        $region79: #{hypergraph_transformer_forward.2} parent=61 // pred_check
          %p1090 = pneg %p80
        $region80: #{hypergraph_transformer_forward.2} parent=61 // pred_check_branch
          %1092 = sbr.rel (%p1090) target = $region82
        $region81: #{hypergraph_transformer_forward.2} parent=61 // pred_region
          _
        $region82: #{hypergraph_transformer_forward.2} parent=61 // pred_fallthru
          _
        // Predicated region
        $region83: #{hypergraph_transformer_forward.2} parent=61 // pred_check
          %p1093 = pneg %p101
        $region84: #{hypergraph_transformer_forward.2} parent=61 // pred_check_branch
          %1095 = sbr.rel (%p1093) target = $region86
        $region85: #{hypergraph_transformer_forward.2} parent=61 // pred_region
          _
        $region86: #{hypergraph_transformer_forward.2} parent=61 // pred_fallthru
          _
      $region62: #{hypergraph_transformer_forward.2} parent=5 // pred_fallthru
        _
      %p1096 = scmp.le.s32.totalorder 2, %s10
      // Predicated region
      $region87: #{hypergraph_transformer_forward.2} parent=5 // pred_check
        %p1097 = pneg %p1096
      $region88: #{hypergraph_transformer_forward.2} parent=5 // pred_check_branch
        %1099 = sbr.rel (%p1097) target = $region90
      $region89: #{hypergraph_transformer_forward.2} parent=5 // pred_region
        %s1100 = ssub.s32 %s10, 2
      $region90: #{hypergraph_transformer_forward.2} parent=5 // pred_fallthru
        _
    $region6: #{hypergraph_transformer_forward.2} parent=1 // loop_footer
      %s14 = sadd.s32 1, %s10
    $region7: #{hypergraph_transformer_forward.2} parent=1 // loop_footer_branch
      %9 = sbr.rel target = $region3
    $region8: #{hypergraph_transformer_forward.2} parent=1 // loop_exit
      _

// kernel: hypergraph_transformer_forward.3
$region0: #{hypergraph_transformer_forward.3}
  #allocation0 [shape = 'u32[]', space=smem, size = 0x4, offset = 0x4, fixed_abs, tag = 'smem constant byte address 0x4 - core index']
  #allocation1 [shape = 'u32[144,128]{1,0:T(1,128)}', space=vmem, size = 0x12000, scoped, tag = 'internal scratch']
  %s0 = inlined_call_operand.vmem [shape: f32[256,128], index: 0, kind: input, shape index: {}]
  %s1 = inlined_call_operand.vmem [shape: f32[4,256,32], index: 1, kind: input, shape index: {}]
  %s2 = inlined_call_operand.vmem [shape: f32[4,32,128], index: 2, kind: input, shape index: {}]
  %s3 = inlined_call_operand.vmem [shape: f32[256,128], index: 3, kind: output, shape index: {}]
  %s4 = sld [smem:[#allocation0]]
  $region83: #{hypergraph_transformer_forward.3} parent=0
    _
  %s6 = ssub.s32 1, %s4
  %s7 = scalar_select 0, %s6, %s4
  $region1: #{hypergraph_transformer_forward.3} parent=0
    #allocation2 [shape = 'u8[262144]{0}', space=vmem, size = 0x40000, scoped, tag = 'input window, operand 1']
    loop: start=0, step=1, limit=6
    $region2: #{hypergraph_transformer_forward.3} parent=1 // loop_pre_header
      _
    $region3: #{hypergraph_transformer_forward.3} parent=1 // loop_header
      %s9 = sphi 0, %s13
      %p10 = scmp.ge.s32.totalorder %s9, 6
      %s19 = sphi 0, %s21
      %s22 = sphi 0, %s19
      %s23 = sphi 0, %s22
      %s39 = sphi 0, %s23
      %s45 = sphi 0, %s47
      %s48 = sphi 0, %s45
      %s49 = sphi 0, %s48
      %s65 = sphi 0, %s49
      %s69 = sphi 0, %s69
      %s71 = sphi 0, %s69
      %s72 = sphi 0, %s71
      %s86 = sphi 0, %s72
      %s92 = sphi 0, %s94
      %s95 = sphi 0, %s92
      %s96 = sphi 0, %s95
      %s112 = sphi 0, %s96
    $region4: #{hypergraph_transformer_forward.3} parent=1 // loop_header_branch
      %12 = sbr.rel (%p10) target = $region8
    $region5: #{hypergraph_transformer_forward.3} parent=1 // loop_body
      %s14 = ssub.s32 %s9, 1
      %s15 = ssub.s32 %s9, 2
      %s16 = sadd.s32 %s9, 1
      %s17 = ssub.s32 %s9, %s16
      %p18 = scmp.eq.s32.totalorder %s17, 0
      %s20 = sadd.s32 %s19, 1
      %s21 = scalar_select %p18, %s19, %s20
      %p24 = pneg %p18
      %p25 = scmp.eq.s32.totalorder %s9, 3
      %p26 = por %p24, %p25
      %p27 = scmp.ne.s32.totalorder %s19, %s22
      %p28 = scmp.eq.s32.totalorder %s9, 0
      %p29 = por %p27, %p28
      %p30 = scmp.ne.s32.totalorder %s19, %s22
      %p31 = scmp.eq.s32.totalorder %s14, 3
      %p32 = por %p30, %p31
      %p33 = scmp.ne.s32.totalorder %s22, %s23
      %p34 = scmp.eq.s32.totalorder %s14, 0
      %p35 = por %p33, %p34
      %p36 = scmp.ne.s32.totalorder %s22, %s23
      %p37 = scmp.eq.s32.totalorder %s15, 3
      %p38 = por %p36, %p37
      %p40 = scmp.ne.s32.totalorder %s23, %s39
      %p41 = scmp.eq.s32.totalorder %s15, 0
      %p42 = por %p40, %p41
      %s43 = ssub.s32 %s9, %s16
      %p44 = scmp.eq.s32.totalorder %s43, 0
      %s46 = sadd.s32 %s45, 1
      %s47 = scalar_select %p44, %s45, %s46
      %p50 = pneg %p44
      %p51 = scmp.eq.s32.totalorder %s9, 3
      %p52 = por %p50, %p51
      %p53 = scmp.ne.s32.totalorder %s45, %s48
      %p54 = scmp.eq.s32.totalorder %s9, 0
      %p55 = por %p53, %p54
      %p56 = scmp.ne.s32.totalorder %s45, %s48
      %p57 = scmp.eq.s32.totalorder %s14, 3
      %p58 = por %p56, %p57
      %p59 = scmp.ne.s32.totalorder %s48, %s49
      %p60 = scmp.eq.s32.totalorder %s14, 0
      %p61 = por %p59, %p60
      %p62 = scmp.ne.s32.totalorder %s48, %s49
      %p63 = scmp.eq.s32.totalorder %s15, 3
      %p64 = por %p62, %p63
      %p66 = scmp.ne.s32.totalorder %s49, %s65
      %p67 = scmp.eq.s32.totalorder %s15, 0
      %p68 = por %p66, %p67
      %s70 = sadd.s32 %s69, 1
      %p73 = scmp.eq.s32.totalorder %s9, 3
      %p74 = scmp.ne.s32.totalorder %s69, %s71
      %p75 = scmp.eq.s32.totalorder %s9, 0
      %p76 = por %p74, %p75
      %p77 = scmp.ne.s32.totalorder %s69, %s71
      %p78 = scmp.eq.s32.totalorder %s14, 3
      %p79 = por %p77, %p78
      %p80 = scmp.ne.s32.totalorder %s71, %s72
      %p81 = scmp.eq.s32.totalorder %s14, 0
      %p82 = por %p80, %p81
      %p83 = scmp.ne.s32.totalorder %s71, %s72
      %p84 = scmp.eq.s32.totalorder %s15, 3
      %p85 = por %p83, %p84
      %p87 = scmp.ne.s32.totalorder %s72, %s86
      %p88 = scmp.eq.s32.totalorder %s15, 0
      %p89 = por %p87, %p88
      %s90 = ssub.s32 %s9, %s16
      %p91 = scmp.eq.s32.totalorder %s90, 0
      %s93 = sadd.s32 %s92, 1
      %s94 = scalar_select %p91, %s92, %s93
      %p97 = pneg %p91
      %p98 = scmp.eq.s32.totalorder %s9, 3
      %p99 = por %p97, %p98
      %p100 = scmp.ne.s32.totalorder %s92, %s95
      %p101 = scmp.eq.s32.totalorder %s9, 0
      %p102 = por %p100, %p101
      %p103 = scmp.ne.s32.totalorder %s92, %s95
      %p104 = scmp.eq.s32.totalorder %s14, 3
      %p105 = por %p103, %p104
      %p106 = scmp.ne.s32.totalorder %s95, %s96
      %p107 = scmp.eq.s32.totalorder %s14, 0
      %p108 = por %p106, %p107
      %p109 = scmp.ne.s32.totalorder %s95, %s96
      %p110 = scmp.eq.s32.totalorder %s15, 3
      %p111 = por %p109, %p110
      %p113 = scmp.ne.s32.totalorder %s96, %s112
      %p114 = scmp.eq.s32.totalorder %s15, 0
      %p115 = por %p113, %p114
      %p116 = scmp.le.s32.totalorder 1, %s9
      %p117 = scmp.lt.s32.totalorder %s9, 5
      %p118 = pnand %p116, %p117
      %p119 = pneg %p118
      // Predicated region
      $region9: #{hypergraph_transformer_forward.3} parent=5 // pred_check
        _
      $region10: #{hypergraph_transformer_forward.3} parent=5 // pred_check_branch
        %121 = sbr.rel (%p118) target = $region12
      $region11: #{hypergraph_transformer_forward.3} parent=5 // pred_region
        %s122 = ssub.s32 %s9, 1
        // Predicated region
        $region13: #{hypergraph_transformer_forward.3} parent=11 // pred_check
          %p123 = pneg %p82
        $region14: #{hypergraph_transformer_forward.3} parent=11 // pred_check_branch
          %125 = sbr.rel (%p123) target = $region16
        $region15: #{hypergraph_transformer_forward.3} parent=11 // pred_region
          _
        $region16: #{hypergraph_transformer_forward.3} parent=11 // pred_fallthru
          _
      $region12: #{hypergraph_transformer_forward.3} parent=5 // pred_fallthru
        _
      %p126 = scmp.lt.s32.totalorder %s9, 4
      // Predicated region
      $region17: #{hypergraph_transformer_forward.3} parent=5 // pred_check
        %p127 = pneg %p126
      $region18: #{hypergraph_transformer_forward.3} parent=5 // pred_check_branch
        %129 = sbr.rel (%p127) target = $region20
      $region19: #{hypergraph_transformer_forward.3} parent=5 // pred_region
        // Predicated region
        $region21: #{hypergraph_transformer_forward.3} parent=19 // pred_check
          %p130 = pneg %p29
        $region22: #{hypergraph_transformer_forward.3} parent=19 // pred_check_branch
          %132 = sbr.rel (%p130) target = $region24
        $region23: #{hypergraph_transformer_forward.3} parent=19 // pred_region
          %s133 = smul.u32 8, %s9
          %p134 = scmp.lt.s32.totalorder %s133, 31
          %s135 = scalar_select %p134, %s133, 31
          %s136 = smul.addr %s135, 8
          %s137 = scalar_lea.vmem %s0, %s136
          %s138 = smul.u32 8, %s9
        $region24: #{hypergraph_transformer_forward.3} parent=19 // pred_fallthru
          _
        // Predicated region
        $region25: #{hypergraph_transformer_forward.3} parent=19 // pred_check
          %p139 = pneg %p55
        $region26: #{hypergraph_transformer_forward.3} parent=19 // pred_check_branch
          %141 = sbr.rel (%p139) target = $region28
        $region27: #{hypergraph_transformer_forward.3} parent=19 // pred_region
          %s142 = sand.u32 %s45, 1
          %s143 = sand.u32 %s45, 1
          %s144 = smul.addr %s143, 256
          %s145 = scalar_lea.vmem [#allocation2], %s144
          %s146 = smul.u32 8, %s9
          %s147 = smul.addr %s146, 8
          %s148 = scalar_lea.vmem %s1, %s147
          // Predicated region
          $region29: #{hypergraph_transformer_forward.3} parent=27 // pred_check
            _
          $region30: #{hypergraph_transformer_forward.3} parent=27 // pred_check_branch
            %150 = sbr.rel (0) target = $region32
          $region31: #{hypergraph_transformer_forward.3} parent=27 // pred_region
            // Predicated region
            $region33: #{hypergraph_transformer_forward.3} parent=31 // pred_check
              _
            $region34: #{hypergraph_transformer_forward.3} parent=31 // pred_check_branch
              %152 = sbr.rel (0) target = $region36
            $region35: #{hypergraph_transformer_forward.3} parent=31 // pred_region
              // Predicated region
              $region48: #{hypergraph_transformer_forward.3} parent=35 // pred_check
                _
              $region49: #{hypergraph_transformer_forward.3} parent=35 // pred_check_branch
                %229 = sbr.rel (0) target = $region51
              $region50: #{hypergraph_transformer_forward.3} parent=35 // pred_region
                loop: start=0, step=1, limit=1
                $region52: #{hypergraph_transformer_forward.3} parent=50 // loop_pre_header
                  _
                $region53: #{hypergraph_transformer_forward.3} parent=50 // loop_header
                  %s231 = sphi 0, %s235
                  %p232 = scmp.ge.s32.totalorder %s231, 1
                  %s236 = sphi %s148, %s148
                  %s237 = sphi %s145, %s145
                $region54: #{hypergraph_transformer_forward.3} parent=50 // loop_header_branch
                  %234 = sbr.rel (%p232) target = $region58
                $region55: #{hypergraph_transformer_forward.3} parent=50 // loop_body
                  %v238 = vld [vmem:[%s236] sm:$0xff]
                  %239 = vst [vmem:[%s237] sm:$0xff] %v238
                  %v240 = vld [vmem:[%s236 + $0x8] sm:$0xff]
                  %241 = vst [vmem:[%s237 + $0x8] sm:$0xff] %v240
                  %v242 = vld [vmem:[%s236 + $0x10] sm:$0xff]
                  %243 = vst [vmem:[%s237 + $0x10] sm:$0xff] %v242
                  %v244 = vld [vmem:[%s236 + $0x18] sm:$0xff]
                  %245 = vst [vmem:[%s237 + $0x18] sm:$0xff] %v244
                  %v246 = vld [vmem:[%s236 + $0x20] sm:$0xff]
                  %247 = vst [vmem:[%s237 + $0x20] sm:$0xff] %v246
                  %v248 = vld [vmem:[%s236 + $0x28] sm:$0xff]
                  %249 = vst [vmem:[%s237 + $0x28] sm:$0xff] %v248
                  %v250 = vld [vmem:[%s236 + $0x30] sm:$0xff]
                  %251 = vst [vmem:[%s237 + $0x30] sm:$0xff] %v250
                  %v252 = vld [vmem:[%s236 + $0x38] sm:$0xff]
                  %253 = vst [vmem:[%s237 + $0x38] sm:$0xff] %v252
                  %v254 = vld [vmem:[%s236 + $0x100] sm:$0xff]
                  %255 = vst [vmem:[%s237 + $0x40] sm:$0xff] %v254
                  %v256 = vld [vmem:[%s236 + $0x108] sm:$0xff]
                  %257 = vst [vmem:[%s237 + $0x48] sm:$0xff] %v256
                  %v258 = vld [vmem:[%s236 + $0x110] sm:$0xff]
                  %259 = vst [vmem:[%s237 + $0x50] sm:$0xff] %v258
                  %v260 = vld [vmem:[%s236 + $0x118] sm:$0xff]
                  %261 = vst [vmem:[%s237 + $0x58] sm:$0xff] %v260
                  %v262 = vld [vmem:[%s236 + $0x120] sm:$0xff]
                  %263 = vst [vmem:[%s237 + $0x60] sm:$0xff] %v262
                  %v264 = vld [vmem:[%s236 + $0x128] sm:$0xff]
                  %265 = vst [vmem:[%s237 + $0x68] sm:$0xff] %v264
                  %v266 = vld [vmem:[%s236 + $0x130] sm:$0xff]
                  %267 = vst [vmem:[%s237 + $0x70] sm:$0xff] %v266
                  %v268 = vld [vmem:[%s236 + $0x138] sm:$0xff]
                  %269 = vst [vmem:[%s237 + $0x78] sm:$0xff] %v268
                  %v270 = vld [vmem:[%s236 + $0x200] sm:$0xff]
                  %271 = vst [vmem:[%s237 + $0x80] sm:$0xff] %v270
                  %v272 = vld [vmem:[%s236 + $0x208] sm:$0xff]
                  %273 = vst [vmem:[%s237 + $0x88] sm:$0xff] %v272
                  %v274 = vld [vmem:[%s236 + $0x210] sm:$0xff]
                  %275 = vst [vmem:[%s237 + $0x90] sm:$0xff] %v274
                  %v276 = vld [vmem:[%s236 + $0x218] sm:$0xff]
                  %277 = vst [vmem:[%s237 + $0x98] sm:$0xff] %v276
                  %v278 = vld [vmem:[%s236 + $0x220] sm:$0xff]
                  %279 = vst [vmem:[%s237 + $0xa0] sm:$0xff] %v278
                  %v280 = vld [vmem:[%s236 + $0x228] sm:$0xff]
                  %281 = vst [vmem:[%s237 + $0xa8] sm:$0xff] %v280
                  %v282 = vld [vmem:[%s236 + $0x230] sm:$0xff]
                  %283 = vst [vmem:[%s237 + $0xb0] sm:$0xff] %v282
                  %v284 = vld [vmem:[%s236 + $0x238] sm:$0xff]
                  %285 = vst [vmem:[%s237 + $0xb8] sm:$0xff] %v284
                  %v286 = vld [vmem:[%s236 + $0x300] sm:$0xff]
                  %287 = vst [vmem:[%s237 + $0xc0] sm:$0xff] %v286
                  %v288 = vld [vmem:[%s236 + $0x308] sm:$0xff]
                  %289 = vst [vmem:[%s237 + $0xc8] sm:$0xff] %v288
                  %v290 = vld [vmem:[%s236 + $0x310] sm:$0xff]
                  %291 = vst [vmem:[%s237 + $0xd0] sm:$0xff] %v290
                  %v292 = vld [vmem:[%s236 + $0x318] sm:$0xff]
                  %293 = vst [vmem:[%s237 + $0xd8] sm:$0xff] %v292
                  %v294 = vld [vmem:[%s236 + $0x320] sm:$0xff]
                  %295 = vst [vmem:[%s237 + $0xe0] sm:$0xff] %v294
                  %v296 = vld [vmem:[%s236 + $0x328] sm:$0xff]
                  %297 = vst [vmem:[%s237 + $0xe8] sm:$0xff] %v296
                  %v298 = vld [vmem:[%s236 + $0x330] sm:$0xff]
                  %299 = vst [vmem:[%s237 + $0xf0] sm:$0xff] %v298
                  %v300 = vld [vmem:[%s236 + $0x338] sm:$0xff]
                  %301 = vst [vmem:[%s237 + $0xf8] sm:$0xff] %v300
                $region56: #{hypergraph_transformer_forward.3} parent=50 // loop_footer
                  %s235 = sadd.s32 1, %s231
                $region57: #{hypergraph_transformer_forward.3} parent=50 // loop_footer_branch
                  %230 = sbr.rel target = $region53
                $region58: #{hypergraph_transformer_forward.3} parent=50 // loop_exit
                  _
              $region51: #{hypergraph_transformer_forward.3} parent=35 // pred_fallthru
                _
              // Predicated region
              $region59: #{hypergraph_transformer_forward.3} parent=35 // pred_check
                _
              $region60: #{hypergraph_transformer_forward.3} parent=35 // pred_check_branch
                %303 = sbr.rel target = $region62
              $region61: #{hypergraph_transformer_forward.3} parent=35 // pred_region
                _
              $region62: #{hypergraph_transformer_forward.3} parent=35 // pred_fallthru
                _
            $region36: #{hypergraph_transformer_forward.3} parent=31 // pred_fallthru
              _
            // Predicated region
            $region37: #{hypergraph_transformer_forward.3} parent=31 // pred_check
              _
            $region38: #{hypergraph_transformer_forward.3} parent=31 // pred_check_branch
              %154 = sbr.rel target = $region40
            $region39: #{hypergraph_transformer_forward.3} parent=31 // pred_region
              loop: start=0, step=1, limit=1
              $region41: #{hypergraph_transformer_forward.3} parent=39 // loop_pre_header
                _
              $region42: #{hypergraph_transformer_forward.3} parent=39 // loop_header
                %s157 = sphi 0, %s161
                %p158 = scmp.ge.s32.totalorder %s157, 1
                %s162 = sphi %s148, %s148
                %s163 = sphi %s145, %s145
              $region43: #{hypergraph_transformer_forward.3} parent=39 // loop_header_branch
                %160 = sbr.rel (%p158) target = $region47
              $region44: #{hypergraph_transformer_forward.3} parent=39 // loop_body
                %v164 = vld [vmem:[%s162] sm:$0xff]
                %165 = vst [vmem:[%s163] sm:$0xff] %v164
                %v166 = vld [vmem:[%s162 + $0x8] sm:$0xff]
                %167 = vst [vmem:[%s163 + $0x8] sm:$0xff] %v166
                %v168 = vld [vmem:[%s162 + $0x10] sm:$0xff]
                %169 = vst [vmem:[%s163 + $0x10] sm:$0xff] %v168
                %v170 = vld [vmem:[%s162 + $0x18] sm:$0xff]
                %171 = vst [vmem:[%s163 + $0x18] sm:$0xff] %v170
                %v172 = vld [vmem:[%s162 + $0x20] sm:$0xff]
                %173 = vst [vmem:[%s163 + $0x20] sm:$0xff] %v172
                %v174 = vld [vmem:[%s162 + $0x28] sm:$0xff]
                %175 = vst [vmem:[%s163 + $0x28] sm:$0xff] %v174
                %v176 = vld [vmem:[%s162 + $0x30] sm:$0xff]
                %177 = vst [vmem:[%s163 + $0x30] sm:$0xff] %v176
                %v178 = vld [vmem:[%s162 + $0x38] sm:$0xff]
                %179 = vst [vmem:[%s163 + $0x38] sm:$0xff] %v178
                %v180 = vld [vmem:[%s162 + $0x100] sm:$0xff]
                %181 = vst [vmem:[%s163 + $0x40] sm:$0xff] %v180
                %v182 = vld [vmem:[%s162 + $0x108] sm:$0xff]
                %183 = vst [vmem:[%s163 + $0x48] sm:$0xff] %v182
                %v184 = vld [vmem:[%s162 + $0x110] sm:$0xff]
                %185 = vst [vmem:[%s163 + $0x50] sm:$0xff] %v184
                %v186 = vld [vmem:[%s162 + $0x118] sm:$0xff]
                %187 = vst [vmem:[%s163 + $0x58] sm:$0xff] %v186
                %v188 = vld [vmem:[%s162 + $0x120] sm:$0xff]
                %189 = vst [vmem:[%s163 + $0x60] sm:$0xff] %v188
                %v190 = vld [vmem:[%s162 + $0x128] sm:$0xff]
                %191 = vst [vmem:[%s163 + $0x68] sm:$0xff] %v190
                %v192 = vld [vmem:[%s162 + $0x130] sm:$0xff]
                %193 = vst [vmem:[%s163 + $0x70] sm:$0xff] %v192
                %v194 = vld [vmem:[%s162 + $0x138] sm:$0xff]
                %195 = vst [vmem:[%s163 + $0x78] sm:$0xff] %v194
                %v196 = vld [vmem:[%s162 + $0x200] sm:$0xff]
                %197 = vst [vmem:[%s163 + $0x80] sm:$0xff] %v196
                %v198 = vld [vmem:[%s162 + $0x208] sm:$0xff]
                %199 = vst [vmem:[%s163 + $0x88] sm:$0xff] %v198
                %v200 = vld [vmem:[%s162 + $0x210] sm:$0xff]
                %201 = vst [vmem:[%s163 + $0x90] sm:$0xff] %v200
                %v202 = vld [vmem:[%s162 + $0x218] sm:$0xff]
                %203 = vst [vmem:[%s163 + $0x98] sm:$0xff] %v202
                %v204 = vld [vmem:[%s162 + $0x220] sm:$0xff]
                %205 = vst [vmem:[%s163 + $0xa0] sm:$0xff] %v204
                %v206 = vld [vmem:[%s162 + $0x228] sm:$0xff]
                %207 = vst [vmem:[%s163 + $0xa8] sm:$0xff] %v206
                %v208 = vld [vmem:[%s162 + $0x230] sm:$0xff]
                %209 = vst [vmem:[%s163 + $0xb0] sm:$0xff] %v208
                %v210 = vld [vmem:[%s162 + $0x238] sm:$0xff]
                %211 = vst [vmem:[%s163 + $0xb8] sm:$0xff] %v210
                %v212 = vld [vmem:[%s162 + $0x300] sm:$0xff]
                %213 = vst [vmem:[%s163 + $0xc0] sm:$0xff] %v212
                %v214 = vld [vmem:[%s162 + $0x308] sm:$0xff]
                %215 = vst [vmem:[%s163 + $0xc8] sm:$0xff] %v214
                %v216 = vld [vmem:[%s162 + $0x310] sm:$0xff]
                %217 = vst [vmem:[%s163 + $0xd0] sm:$0xff] %v216
                %v218 = vld [vmem:[%s162 + $0x318] sm:$0xff]
                %219 = vst [vmem:[%s163 + $0xd8] sm:$0xff] %v218
                %v220 = vld [vmem:[%s162 + $0x320] sm:$0xff]
                %221 = vst [vmem:[%s163 + $0xe0] sm:$0xff] %v220
                %v222 = vld [vmem:[%s162 + $0x328] sm:$0xff]
                %223 = vst [vmem:[%s163 + $0xe8] sm:$0xff] %v222
                %v224 = vld [vmem:[%s162 + $0x330] sm:$0xff]
                %225 = vst [vmem:[%s163 + $0xf0] sm:$0xff] %v224
                %v226 = vld [vmem:[%s162 + $0x338] sm:$0xff]
                %227 = vst [vmem:[%s163 + $0xf8] sm:$0xff] %v226
              $region45: #{hypergraph_transformer_forward.3} parent=39 // loop_footer
                %s161 = sadd.s32 1, %s157
              $region46: #{hypergraph_transformer_forward.3} parent=39 // loop_footer_branch
                %156 = sbr.rel target = $region42
              $region47: #{hypergraph_transformer_forward.3} parent=39 // loop_exit
                _
            $region40: #{hypergraph_transformer_forward.3} parent=31 // pred_fallthru
              _
          $region32: #{hypergraph_transformer_forward.3} parent=27 // pred_fallthru
            _
          %304 = vnop
        $region28: #{hypergraph_transformer_forward.3} parent=19 // pred_fallthru
          _
      $region20: #{hypergraph_transformer_forward.3} parent=5 // pred_fallthru
        _
      %p305 = scmp.le.s32.totalorder 1, %s9
      %p306 = scmp.lt.s32.totalorder %s9, 5
      %p307 = pnand %p305, %p306
      %p308 = pneg %p307
      // Predicated region
      $region63: #{hypergraph_transformer_forward.3} parent=5 // pred_check
        _
      $region64: #{hypergraph_transformer_forward.3} parent=5 // pred_check_branch
        %310 = sbr.rel (%p307) target = $region66
      $region65: #{hypergraph_transformer_forward.3} parent=5 // pred_region
        %s311 = ssub.s32 %s9, 1
        %s312 = sand.u32 %s48, 1
        %s313 = sand.u32 %s48, 1
        %s314 = smul.addr %s313, 256
        %s315 = scalar_lea.vmem [#allocation2], %s314
        // Predicated region
        $region67: #{hypergraph_transformer_forward.3} parent=65 // pred_check
          %p316 = pneg %p61
        $region68: #{hypergraph_transformer_forward.3} parent=65 // pred_check_branch
          %318 = sbr.rel (%p316) target = $region70
        $region69: #{hypergraph_transformer_forward.3} parent=65 // pred_region
          _
        $region70: #{hypergraph_transformer_forward.3} parent=65 // pred_fallthru
          _
        %s319 = smul.u32 8, %s14
        %p320 = scmp.lt.s32.totalorder %s319, 31
        %s321 = scalar_select %p320, %s319, 31
        %s322 = smul.addr %s321, 8
        %s323 = scalar_lea.vmem %s0, %s322
        %p324 = pneg %p35
        %p325 = pneg %p32
        %s326 = sand.u32 %s48, 1
        %s327 = sand.u32 %s48, 1
        %s328 = smul.addr %s327, 256
        %s329 = scalar_lea.vmem [#allocation2], %s328
        %p330 = pneg %p61
        %p331 = pneg %p58
        %p332 = pneg %p82
        %p333 = pneg %p79
        %p334 = pneg %p108
        %p335 = pneg %p105
        %s336 = smul.u32 8, %s14
        %p337 = scmp.lt.s32.totalorder %s336, 31
        %s338 = scalar_select %p337, %s336, 31
        %s339 = smul.addr %s338, 8
        %s340 = scalar_lea.vmem %s3, %s339
        %s341 = smul.u32 8, %s14
        %p342 = scmp.lt.s32.totalorder %s341, 31
        %s343 = scalar_select %p342, %s341, 31
        %s344 = smul.addr %s343, 8
        %s345 = scalar_lea.vmem %s0, %s344
        %s346 = smul.u32 8, %s14
        %s347 = smul.u32 8, %s14
        %s348 = smul.u32 8, %s14
        %p349 = scmp.lt.s32.totalorder %s348, 31
        %s350 = scalar_select %p349, %s348, 31
        %s351 = smul.addr %s350, 8
        %s352 = scalar_lea.vmem %s3, %s351
        %s353 = smul.u32 8, %s14
        %v354 = vld [vmem:[%s345] sm:$0xff]
        %v355 = vld [vmem:[%s345 + $0x8] sm:$0xff]
        %v356 = vld [vmem:[%s345 + $0x10] sm:$0xff]
        %v357 = vld [vmem:[%s345 + $0x18] sm:$0xff]
        %v358 = vld [vmem:[%s345 + $0x20] sm:$0xff]
        %v359 = vld [vmem:[%s345 + $0x28] sm:$0xff]
        %v360 = vld [vmem:[%s345 + $0x30] sm:$0xff]
        %v361 = vld [vmem:[%s345 + $0x38] sm:$0xff]
        %v362 = vld [vmem:[%s315] sm:$0xff]
        %v363 = vld [vmem:[%s315 + $0x8] sm:$0xff]
        %v364 = vld [vmem:[%s315 + $0x10] sm:$0xff]
        %v365 = vld [vmem:[%s315 + $0x18] sm:$0xff]
        %v366 = vld [vmem:[%s315 + $0x20] sm:$0xff]
        %v367 = vld [vmem:[%s315 + $0x28] sm:$0xff]
        %v368 = vld [vmem:[%s315 + $0x30] sm:$0xff]
        %v369 = vld [vmem:[%s315 + $0x38] sm:$0xff]
        %v370 = vld [vmem:[%s2] sm:$0xff]
        %v371 = vld [vmem:[%s2 + $0x8] sm:$0xff]
        %v372 = vld [vmem:[%s2 + $0x10] sm:$0xff]
        %v373 = vld [vmem:[%s2 + $0x18] sm:$0xff]
        %vm374 = vcmask 261120
        %v376 = vsel %vm374, %v362, 0
        %v379 = vsel %vm374, %v363, 0
        %v382 = vsel %vm374, %v364, 0
        %v385 = vsel %vm374, %v365, 0
        %v388 = vsel %vm374, %v366, 0
        %v391 = vsel %vm374, %v367, 0
        %v394 = vsel %vm374, %v368, 0
        %v397 = vsel %vm374, %v369, 0
        %399 = vmatprep.subr.mxu0 0.0
        %400 = vmatpush1.msra.mxu0 %v370
        %401 = vmatprep.subr.mxu0 0.0
        %402 = vmatpush1.msra.mxu0 %v371
        %403 = vmatprep.subr.mxu0 0.0
        %404 = vmatpush1.msra.mxu0 %v372
        %405 = vmatprep.subr.mxu0 0.0
        %406 = vmatpush1.msra.mxu0 %v373
        %407 = vmatprep.subr.mxu0 0.0
        %408 = vmatpush1.msra.mxu0 0.0
        %409 = vmatprep.subr.mxu0 0.0
        %410 = vmatpush1.msra.mxu0 0.0
        %411 = vmatprep.subr.mxu0 0.0
        %412 = vmatpush1.msra.mxu0 0.0
        %413 = vmatprep.subr.mxu0 0.0
        %414 = vmatpush1.msra.mxu0 0.0
        %415 = vmatprep.subr.mxu0 0.0
        %416 = vmatpush1.msra.mxu0 0.0
        %417 = vmatprep.subr.mxu0 0.0
        %418 = vmatpush1.msra.mxu0 0.0
        %419 = vmatprep.subr.mxu0 0.0
        %420 = vmatpush1.msra.mxu0 0.0
        %421 = vmatprep.subr.mxu0 0.0
        %422 = vmatpush1.msra.mxu0 0.0
        %423 = vmatprep.subr.mxu0 0.0
        %424 = vmatpush1.msra.mxu0 0.0
        %425 = vmatprep.subr.mxu0 0.0
        %426 = vmatpush1.msra.mxu0 0.0
        %427 = vmatprep.subr.mxu0 0.0
        %428 = vmatpush1.msra.mxu0 0.0
        %429 = vmatprep.subr.mxu0 0.0
        %430 = vmatpush1.msra.mxu0 0.0
        %431 = vmatprep.subr.mxu0 0.0
        %432 = vmatpush1.msra.mxu0 0.0
        %433 = vmatprep.subr.mxu0 0.0
        %434 = vmatpush1.msra.mxu0 0.0
        %435 = vmatprep.subr.mxu0 0.0
        %436 = vmatpush1.msra.mxu0 0.0
        %437 = vmatprep.subr.mxu0 0.0
        %438 = vmatpush1.msra.mxu0 0.0
        %439 = vmatprep.subr.mxu0 0.0
        %440 = vmatpush1.msra.mxu0 0.0
        %441 = vmatprep.subr.mxu0 0.0
        %442 = vmatpush1.msra.mxu0 0.0
        %443 = vmatprep.subr.mxu0 0.0
        %444 = vmatpush1.msra.mxu0 0.0
        %445 = vmatprep.subr.mxu0 0.0
        %446 = vmatpush1.msra.mxu0 0.0
        %447 = vmatprep.subr.mxu0 0.0
        %448 = vmatpush1.msra.mxu0 0.0
        %449 = vmatprep.subr.mxu0 0.0
        %450 = vmatpush1.msra.mxu0 0.0
        %451 = vmatprep.subr.mxu0 0.0
        %452 = vmatpush1.msra.mxu0 0.0
        %453 = vmatprep.subr.mxu0 0.0
        %454 = vmatpush1.msra.mxu0 0.0
        %455 = vmatprep.subr.mxu0 0.0
        %456 = vmatpush1.msra.mxu0 0.0
        %457 = vmatprep.subr.mxu0 0.0
        %458 = vmatpush1.msra.mxu0 0.0
        %459 = vmatprep.subr.mxu0 0.0
        %460 = vmatpush1.msra.mxu0 0.0
        %461 = vmatprep.subr.mxu0 0.0
        %462 = vmatpush1.msra.mxu0 0.0
        %463 = vmatprep.mubr.f32.mxu0 0.0
        %464 = vmatmul.mubr.f32.gmra.mrb[0].mxu0 %v376
        %v465 = vpop.f32.mrb[0].mxu0
        %v466 = vadd.f32 0.0, %v465
        %v467 = vpop.f32.mrb[0].mxu0
        %468 = vmatprep.mubr.f32.mxu0 0.0
        %469 = vmatmul.mubr.f32.gmra.mrb[0].mxu0 %v379
        %v470 = vpop.f32.mrb[0].mxu0
        %v471 = vadd.f32 0.0, %v470
        %v472 = vpop.f32.mrb[0].mxu0
        %473 = vmatprep.mubr.f32.mxu0 0.0
        %474 = vmatmul.mubr.f32.gmra.mrb[0].mxu0 %v382
        %v475 = vpop.f32.mrb[0].mxu0
        %v476 = vadd.f32 0.0, %v475
        %v477 = vpop.f32.mrb[0].mxu0
        %478 = vmatprep.mubr.f32.mxu0 0.0
        %479 = vmatmul.mubr.f32.gmra.mrb[0].mxu0 %v385
        %v480 = vpop.f32.mrb[0].mxu0
        %v481 = vadd.f32 0.0, %v480
        %v482 = vpop.f32.mrb[0].mxu0
        %483 = vmatprep.mubr.f32.mxu0 0.0
        %484 = vmatmul.mubr.f32.gmra.mrb[0].mxu0 %v388
        %v485 = vpop.f32.mrb[0].mxu0
        %v486 = vadd.f32 0.0, %v485
        %v487 = vpop.f32.mrb[0].mxu0
        %488 = vmatprep.mubr.f32.mxu0 0.0
        %489 = vmatmul.mubr.f32.gmra.mrb[0].mxu0 %v391
        %v490 = vpop.f32.mrb[0].mxu0
        %v491 = vadd.f32 0.0, %v490
        %v492 = vpop.f32.mrb[0].mxu0
        %493 = vmatprep.mubr.f32.mxu0 0.0
        %494 = vmatmul.mubr.f32.gmra.mrb[0].mxu0 %v394
        %v495 = vpop.f32.mrb[0].mxu0
        %v496 = vadd.f32 0.0, %v495
        %v497 = vpop.f32.mrb[0].mxu0
        %498 = vmatprep.mubr.f32.mxu0 0.0
        %499 = vmatmul.mubr.f32.gmra.mrb[0].mxu0 %v397
        %v500 = vpop.f32.mrb[0].mxu0
        %v501 = vadd.f32 0.0, %v500
        %v502 = vpop.f32.mrb[0].mxu0
        %503 = vdwg.mxu0
        %v504 = vadd.f32 %v354, %v466
        %v505 = vadd.f32 %v355, %v471
        %v506 = vadd.f32 %v356, %v476
        %v507 = vadd.f32 %v357, %v481
        %v508 = vadd.f32 %v358, %v486
        %v509 = vadd.f32 %v359, %v491
        %v510 = vadd.f32 %v360, %v496
        %v511 = vadd.f32 %v361, %v501
        %s512 = scalar_lea.vmem %s315, 64 [#allocation2]
        %v513 = vld [vmem:[%s512] sm:$0xff]
        %v514 = vld [vmem:[%s512 + $0x8] sm:$0xff]
        %v515 = vld [vmem:[%s512 + $0x10] sm:$0xff]
        %v516 = vld [vmem:[%s512 + $0x18] sm:$0xff]
        %v517 = vld [vmem:[%s512 + $0x20] sm:$0xff]
        %v518 = vld [vmem:[%s512 + $0x28] sm:$0xff]
        %v519 = vld [vmem:[%s512 + $0x30] sm:$0xff]
        %v520 = vld [vmem:[%s512 + $0x38] sm:$0xff]
        %s521 = scalar_lea.vmem %s2, 32
        %v522 = vld [vmem:[%s521] sm:$0xff]
        %v523 = vld [vmem:[%s521 + $0x8] sm:$0xff]
        %v524 = vld [vmem:[%s521 + $0x10] sm:$0xff]
        %v525 = vld [vmem:[%s521 + $0x18] sm:$0xff]
        %v527 = vsel %vm374, %v513, 0
        %v530 = vsel %vm374, %v514, 0
        %v533 = vsel %vm374, %v515, 0
        %v536 = vsel %vm374, %v516, 0
        %v539 = vsel %vm374, %v517, 0
        %v542 = vsel %vm374, %v518, 0
        %v545 = vsel %vm374, %v519, 0
        %v548 = vsel %vm374, %v520, 0
        %550 = vmatprep.subr.mxu0 0.0
        %551 = vmatpush1.msra.mxu0 %v522
        %552 = vmatprep.subr.mxu0 0.0
        %553 = vmatpush1.msra.mxu0 %v523
        %554 = vmatprep.subr.mxu0 0.0
        %555 = vmatpush1.msra.mxu0 %v524
        %556 = vmatprep.subr.mxu0 0.0
        %557 = vmatpush1.msra.mxu0 %v525
        %558 = vmatprep.subr.mxu0 0.0
        %559 = vmatpush1.msra.mxu0 0.0
        %560 = vmatprep.subr.mxu0 0.0
        %561 = vmatpush1.msra.mxu0 0.0
        %562 = vmatprep.subr.mxu0 0.0
        %563 = vmatpush1.msra.mxu0 0.0
        %564 = vmatprep.subr.mxu0 0.0
        %565 = vmatpush1.msra.mxu0 0.0
        %566 = vmatprep.subr.mxu0 0.0
        %567 = vmatpush1.msra.mxu0 0.0
        %568 = vmatprep.subr.mxu0 0.0
        %569 = vmatpush1.msra.mxu0 0.0
        %570 = vmatprep.subr.mxu0 0.0
        %571 = vmatpush1.msra.mxu0 0.0
        %572 = vmatprep.subr.mxu0 0.0
        %573 = vmatpush1.msra.mxu0 0.0
        %574 = vmatprep.subr.mxu0 0.0
        %575 = vmatpush1.msra.mxu0 0.0
        %576 = vmatprep.subr.mxu0 0.0
        %577 = vmatpush1.msra.mxu0 0.0
        %578 = vmatprep.subr.mxu0 0.0
        %579 = vmatpush1.msra.mxu0 0.0
        %580 = vmatprep.subr.mxu0 0.0
        %581 = vmatpush1.msra.mxu0 0.0
        %582 = vmatprep.subr.mxu0 0.0
        %583 = vmatpush1.msra.mxu0 0.0
        %584 = vmatprep.subr.mxu0 0.0
        %585 = vmatpush1.msra.mxu0 0.0
        %586 = vmatprep.subr.mxu0 0.0
        %587 = vmatpush1.msra.mxu0 0.0
        %588 = vmatprep.subr.mxu0 0.0
        %589 = vmatpush1.msra.mxu0 0.0
        %590 = vmatprep.subr.mxu0 0.0
        %591 = vmatpush1.msra.mxu0 0.0
        %592 = vmatprep.subr.mxu0 0.0
        %593 = vmatpush1.msra.mxu0 0.0
        %594 = vmatprep.subr.mxu0 0.0
        %595 = vmatpush1.msra.mxu0 0.0
        %596 = vmatprep.subr.mxu0 0.0
        %597 = vmatpush1.msra.mxu0 0.0
        %598 = vmatprep.subr.mxu0 0.0
        %599 = vmatpush1.msra.mxu0 0.0
        %600 = vmatprep.subr.mxu0 0.0
        %601 = vmatpush1.msra.mxu0 0.0
        %602 = vmatprep.subr.mxu0 0.0
        %603 = vmatpush1.msra.mxu0 0.0
        %604 = vmatprep.subr.mxu0 0.0
        %605 = vmatpush1.msra.mxu0 0.0
        %606 = vmatprep.subr.mxu0 0.0
        %607 = vmatpush1.msra.mxu0 0.0
        %608 = vmatprep.subr.mxu0 0.0
        %609 = vmatpush1.msra.mxu0 0.0
        %610 = vmatprep.subr.mxu0 0.0
        %611 = vmatpush1.msra.mxu0 0.0
        %612 = vmatprep.subr.mxu0 0.0
        %613 = vmatpush1.msra.mxu0 0.0
        %614 = vmatprep.mubr.f32.mxu0 0.0
        %615 = vmatmul.mubr.f32.gmra.mrb[0].mxu0 %v527
        %v616 = vpop.f32.mrb[0].mxu0
        %v617 = vadd.f32 0.0, %v616
        %v618 = vpop.f32.mrb[0].mxu0
        %619 = vmatprep.mubr.f32.mxu0 0.0
        %620 = vmatmul.mubr.f32.gmra.mrb[0].mxu0 %v530
        %v621 = vpop.f32.mrb[0].mxu0
        %v622 = vadd.f32 0.0, %v621
        %v623 = vpop.f32.mrb[0].mxu0
        %624 = vmatprep.mubr.f32.mxu0 0.0
        %625 = vmatmul.mubr.f32.gmra.mrb[0].mxu0 %v533
        %v626 = vpop.f32.mrb[0].mxu0
        %v627 = vadd.f32 0.0, %v626
        %v628 = vpop.f32.mrb[0].mxu0
        %629 = vmatprep.mubr.f32.mxu0 0.0
        %630 = vmatmul.mubr.f32.gmra.mrb[0].mxu0 %v536
        %v631 = vpop.f32.mrb[0].mxu0
        %v632 = vadd.f32 0.0, %v631
        %v633 = vpop.f32.mrb[0].mxu0
        %634 = vmatprep.mubr.f32.mxu0 0.0
        %635 = vmatmul.mubr.f32.gmra.mrb[0].mxu0 %v539
        %v636 = vpop.f32.mrb[0].mxu0
        %v637 = vadd.f32 0.0, %v636
        %v638 = vpop.f32.mrb[0].mxu0
        %639 = vmatprep.mubr.f32.mxu0 0.0
        %640 = vmatmul.mubr.f32.gmra.mrb[0].mxu0 %v542
        %v641 = vpop.f32.mrb[0].mxu0
        %v642 = vadd.f32 0.0, %v641
        %v643 = vpop.f32.mrb[0].mxu0
        %644 = vmatprep.mubr.f32.mxu0 0.0
        %645 = vmatmul.mubr.f32.gmra.mrb[0].mxu0 %v545
        %v646 = vpop.f32.mrb[0].mxu0
        %v647 = vadd.f32 0.0, %v646
        %v648 = vpop.f32.mrb[0].mxu0
        %649 = vmatprep.mubr.f32.mxu0 0.0
        %650 = vmatmul.mubr.f32.gmra.mrb[0].mxu0 %v548
        %v651 = vpop.f32.mrb[0].mxu0
        %v652 = vadd.f32 0.0, %v651
        %v653 = vpop.f32.mrb[0].mxu0
        %654 = vdwg.mxu0
        %v655 = vadd.f32 %v504, %v617
        %v656 = vadd.f32 %v505, %v622
        %v657 = vadd.f32 %v506, %v627
        %v658 = vadd.f32 %v507, %v632
        %v659 = vadd.f32 %v508, %v637
        %v660 = vadd.f32 %v509, %v642
        %v661 = vadd.f32 %v510, %v647
        %v662 = vadd.f32 %v511, %v652
        %s663 = scalar_lea.vmem %s315, 128 [#allocation2]
        %v664 = vld [vmem:[%s663] sm:$0xff]
        %v665 = vld [vmem:[%s663 + $0x8] sm:$0xff]
        %v666 = vld [vmem:[%s663 + $0x10] sm:$0xff]
        %v667 = vld [vmem:[%s663 + $0x18] sm:$0xff]
        %v668 = vld [vmem:[%s663 + $0x20] sm:$0xff]
        %v669 = vld [vmem:[%s663 + $0x28] sm:$0xff]
        %v670 = vld [vmem:[%s663 + $0x30] sm:$0xff]
        %v671 = vld [vmem:[%s663 + $0x38] sm:$0xff]
        %s672 = scalar_lea.vmem %s2, 64
        %v673 = vld [vmem:[%s672] sm:$0xff]
        %v674 = vld [vmem:[%s672 + $0x8] sm:$0xff]
        %v675 = vld [vmem:[%s672 + $0x10] sm:$0xff]
        %v676 = vld [vmem:[%s672 + $0x18] sm:$0xff]
        %v678 = vsel %vm374, %v664, 0
        %v681 = vsel %vm374, %v665, 0
        %v684 = vsel %vm374, %v666, 0
        %v687 = vsel %vm374, %v667, 0
        %v690 = vsel %vm374, %v668, 0
        %v693 = vsel %vm374, %v669, 0
        %v696 = vsel %vm374, %v670, 0
        %v699 = vsel %vm374, %v671, 0
        %701 = vmatprep.subr.mxu0 0.0
        %702 = vmatpush1.msra.mxu0 %v673
        %703 = vmatprep.subr.mxu0 0.0
        %704 = vmatpush1.msra.mxu0 %v674
        %705 = vmatprep.subr.mxu0 0.0
        %706 = vmatpush1.msra.mxu0 %v675
        %707 = vmatprep.subr.mxu0 0.0
        %708 = vmatpush1.msra.mxu0 %v676
        %709 = vmatprep.subr.mxu0 0.0
        %710 = vmatpush1.msra.mxu0 0.0
        %711 = vmatprep.subr.mxu0 0.0
        %712 = vmatpush1.msra.mxu0 0.0
        %713 = vmatprep.subr.mxu0 0.0
        %714 = vmatpush1.msra.mxu0 0.0
        %715 = vmatprep.subr.mxu0 0.0
        %716 = vmatpush1.msra.mxu0 0.0
        %717 = vmatprep.subr.mxu0 0.0
        %718 = vmatpush1.msra.mxu0 0.0
        %719 = vmatprep.subr.mxu0 0.0
        %720 = vmatpush1.msra.mxu0 0.0
        %721 = vmatprep.subr.mxu0 0.0
        %722 = vmatpush1.msra.mxu0 0.0
        %723 = vmatprep.subr.mxu0 0.0
        %724 = vmatpush1.msra.mxu0 0.0
        %725 = vmatprep.subr.mxu0 0.0
        %726 = vmatpush1.msra.mxu0 0.0
        %727 = vmatprep.subr.mxu0 0.0
        %728 = vmatpush1.msra.mxu0 0.0
        %729 = vmatprep.subr.mxu0 0.0
        %730 = vmatpush1.msra.mxu0 0.0
        %731 = vmatprep.subr.mxu0 0.0
        %732 = vmatpush1.msra.mxu0 0.0
        %733 = vmatprep.subr.mxu0 0.0
        %734 = vmatpush1.msra.mxu0 0.0
        %735 = vmatprep.subr.mxu0 0.0
        %736 = vmatpush1.msra.mxu0 0.0
        %737 = vmatprep.subr.mxu0 0.0
        %738 = vmatpush1.msra.mxu0 0.0
        %739 = vmatprep.subr.mxu0 0.0
        %740 = vmatpush1.msra.mxu0 0.0
        %741 = vmatprep.subr.mxu0 0.0
        %742 = vmatpush1.msra.mxu0 0.0
        %743 = vmatprep.subr.mxu0 0.0
        %744 = vmatpush1.msra.mxu0 0.0
        %745 = vmatprep.subr.mxu0 0.0
        %746 = vmatpush1.msra.mxu0 0.0
        %747 = vmatprep.subr.mxu0 0.0
        %748 = vmatpush1.msra.mxu0 0.0
        %749 = vmatprep.subr.mxu0 0.0
        %750 = vmatpush1.msra.mxu0 0.0
        %751 = vmatprep.subr.mxu0 0.0
        %752 = vmatpush1.msra.mxu0 0.0
        %753 = vmatprep.subr.mxu0 0.0
        %754 = vmatpush1.msra.mxu0 0.0
        %755 = vmatprep.subr.mxu0 0.0
        %756 = vmatpush1.msra.mxu0 0.0
        %757 = vmatprep.subr.mxu0 0.0
        %758 = vmatpush1.msra.mxu0 0.0
        %759 = vmatprep.subr.mxu0 0.0
        %760 = vmatpush1.msra.mxu0 0.0
        %761 = vmatprep.subr.mxu0 0.0
        %762 = vmatpush1.msra.mxu0 0.0
        %763 = vmatprep.subr.mxu0 0.0
        %764 = vmatpush1.msra.mxu0 0.0
        %765 = vmatprep.mubr.f32.mxu0 0.0
        %766 = vmatmul.mubr.f32.gmra.mrb[0].mxu0 %v678
        %v767 = vpop.f32.mrb[0].mxu0
        %v768 = vadd.f32 0.0, %v767
        %v769 = vpop.f32.mrb[0].mxu0
        %770 = vmatprep.mubr.f32.mxu0 0.0
        %771 = vmatmul.mubr.f32.gmra.mrb[0].mxu0 %v681
        %v772 = vpop.f32.mrb[0].mxu0
        %v773 = vadd.f32 0.0, %v772
        %v774 = vpop.f32.mrb[0].mxu0
        %775 = vmatprep.mubr.f32.mxu0 0.0
        %776 = vmatmul.mubr.f32.gmra.mrb[0].mxu0 %v684
        %v777 = vpop.f32.mrb[0].mxu0
        %v778 = vadd.f32 0.0, %v777
        %v779 = vpop.f32.mrb[0].mxu0
        %780 = vmatprep.mubr.f32.mxu0 0.0
        %781 = vmatmul.mubr.f32.gmra.mrb[0].mxu0 %v687
        %v782 = vpop.f32.mrb[0].mxu0
        %v783 = vadd.f32 0.0, %v782
        %v784 = vpop.f32.mrb[0].mxu0
        %785 = vmatprep.mubr.f32.mxu0 0.0
        %786 = vmatmul.mubr.f32.gmra.mrb[0].mxu0 %v690
        %v787 = vpop.f32.mrb[0].mxu0
        %v788 = vadd.f32 0.0, %v787
        %v789 = vpop.f32.mrb[0].mxu0
        %790 = vmatprep.mubr.f32.mxu0 0.0
        %791 = vmatmul.mubr.f32.gmra.mrb[0].mxu0 %v693
        %v792 = vpop.f32.mrb[0].mxu0
        %v793 = vadd.f32 0.0, %v792
        %v794 = vpop.f32.mrb[0].mxu0
        %795 = vmatprep.mubr.f32.mxu0 0.0
        %796 = vmatmul.mubr.f32.gmra.mrb[0].mxu0 %v696
        %v797 = vpop.f32.mrb[0].mxu0
        %v798 = vadd.f32 0.0, %v797
        %v799 = vpop.f32.mrb[0].mxu0
        %800 = vmatprep.mubr.f32.mxu0 0.0
        %801 = vmatmul.mubr.f32.gmra.mrb[0].mxu0 %v699
        %v802 = vpop.f32.mrb[0].mxu0
        %v803 = vadd.f32 0.0, %v802
        %v804 = vpop.f32.mrb[0].mxu0
        %805 = vdwg.mxu0
        %v806 = vadd.f32 %v655, %v768
        %v807 = vadd.f32 %v656, %v773
        %v808 = vadd.f32 %v657, %v778
        %v809 = vadd.f32 %v658, %v783
        %v810 = vadd.f32 %v659, %v788
        %v811 = vadd.f32 %v660, %v793
        %v812 = vadd.f32 %v661, %v798
        %v813 = vadd.f32 %v662, %v803
        %s814 = scalar_lea.vmem %s315, 192 [#allocation2]
        %v815 = vld [vmem:[%s814] sm:$0xff]
        %v816 = vld [vmem:[%s814 + $0x8] sm:$0xff]
        %v817 = vld [vmem:[%s814 + $0x10] sm:$0xff]
        %v818 = vld [vmem:[%s814 + $0x18] sm:$0xff]
        %v819 = vld [vmem:[%s814 + $0x20] sm:$0xff]
        %v820 = vld [vmem:[%s814 + $0x28] sm:$0xff]
        %v821 = vld [vmem:[%s814 + $0x30] sm:$0xff]
        %v822 = vld [vmem:[%s814 + $0x38] sm:$0xff]
        %s823 = scalar_lea.vmem %s2, 96
        %v824 = vld [vmem:[%s823] sm:$0xff]
        %v825 = vld [vmem:[%s823 + $0x8] sm:$0xff]
        %v826 = vld [vmem:[%s823 + $0x10] sm:$0xff]
        %v827 = vld [vmem:[%s823 + $0x18] sm:$0xff]
        %v829 = vsel %vm374, %v815, 0
        %v832 = vsel %vm374, %v816, 0
        %v835 = vsel %vm374, %v817, 0
        %v838 = vsel %vm374, %v818, 0
        %v841 = vsel %vm374, %v819, 0
        %v844 = vsel %vm374, %v820, 0
        %v847 = vsel %vm374, %v821, 0
        %v850 = vsel %vm374, %v822, 0
        %852 = vmatprep.subr.mxu0 0.0
        %853 = vmatpush1.msra.mxu0 %v824
        %854 = vmatprep.subr.mxu0 0.0
        %855 = vmatpush1.msra.mxu0 %v825
        %856 = vmatprep.subr.mxu0 0.0
        %857 = vmatpush1.msra.mxu0 %v826
        %858 = vmatprep.subr.mxu0 0.0
        %859 = vmatpush1.msra.mxu0 %v827
        %860 = vmatprep.subr.mxu0 0.0
        %861 = vmatpush1.msra.mxu0 0.0
        %862 = vmatprep.subr.mxu0 0.0
        %863 = vmatpush1.msra.mxu0 0.0
        %864 = vmatprep.subr.mxu0 0.0
        %865 = vmatpush1.msra.mxu0 0.0
        %866 = vmatprep.subr.mxu0 0.0
        %867 = vmatpush1.msra.mxu0 0.0
        %868 = vmatprep.subr.mxu0 0.0
        %869 = vmatpush1.msra.mxu0 0.0
        %870 = vmatprep.subr.mxu0 0.0
        %871 = vmatpush1.msra.mxu0 0.0
        %872 = vmatprep.subr.mxu0 0.0
        %873 = vmatpush1.msra.mxu0 0.0
        %874 = vmatprep.subr.mxu0 0.0
        %875 = vmatpush1.msra.mxu0 0.0
        %876 = vmatprep.subr.mxu0 0.0
        %877 = vmatpush1.msra.mxu0 0.0
        %878 = vmatprep.subr.mxu0 0.0
        %879 = vmatpush1.msra.mxu0 0.0
        %880 = vmatprep.subr.mxu0 0.0
        %881 = vmatpush1.msra.mxu0 0.0
        %882 = vmatprep.subr.mxu0 0.0
        %883 = vmatpush1.msra.mxu0 0.0
        %884 = vmatprep.subr.mxu0 0.0
        %885 = vmatpush1.msra.mxu0 0.0
        %886 = vmatprep.subr.mxu0 0.0
        %887 = vmatpush1.msra.mxu0 0.0
        %888 = vmatprep.subr.mxu0 0.0
        %889 = vmatpush1.msra.mxu0 0.0
        %890 = vmatprep.subr.mxu0 0.0
        %891 = vmatpush1.msra.mxu0 0.0
        %892 = vmatprep.subr.mxu0 0.0
        %893 = vmatpush1.msra.mxu0 0.0
        %894 = vmatprep.subr.mxu0 0.0
        %895 = vmatpush1.msra.mxu0 0.0
        %896 = vmatprep.subr.mxu0 0.0
        %897 = vmatpush1.msra.mxu0 0.0
        %898 = vmatprep.subr.mxu0 0.0
        %899 = vmatpush1.msra.mxu0 0.0
        %900 = vmatprep.subr.mxu0 0.0
        %901 = vmatpush1.msra.mxu0 0.0
        %902 = vmatprep.subr.mxu0 0.0
        %903 = vmatpush1.msra.mxu0 0.0
        %904 = vmatprep.subr.mxu0 0.0
        %905 = vmatpush1.msra.mxu0 0.0
        %906 = vmatprep.subr.mxu0 0.0
        %907 = vmatpush1.msra.mxu0 0.0
        %908 = vmatprep.subr.mxu0 0.0
        %909 = vmatpush1.msra.mxu0 0.0
        %910 = vmatprep.subr.mxu0 0.0
        %911 = vmatpush1.msra.mxu0 0.0
        %912 = vmatprep.subr.mxu0 0.0
        %913 = vmatpush1.msra.mxu0 0.0
        %914 = vmatprep.subr.mxu0 0.0
        %915 = vmatpush1.msra.mxu0 0.0
        %916 = vmatprep.mubr.f32.mxu0 0.0
        %917 = vmatmul.mubr.f32.gmra.mrb[0].mxu0 %v829
        %v918 = vpop.f32.mrb[0].mxu0
        %v919 = vadd.f32 0.0, %v918
        %v920 = vpop.f32.mrb[0].mxu0
        %921 = vmatprep.mubr.f32.mxu0 0.0
        %922 = vmatmul.mubr.f32.gmra.mrb[0].mxu0 %v832
        %v923 = vpop.f32.mrb[0].mxu0
        %v924 = vadd.f32 0.0, %v923
        %v925 = vpop.f32.mrb[0].mxu0
        %926 = vmatprep.mubr.f32.mxu0 0.0
        %927 = vmatmul.mubr.f32.gmra.mrb[0].mxu0 %v835
        %v928 = vpop.f32.mrb[0].mxu0
        %v929 = vadd.f32 0.0, %v928
        %v930 = vpop.f32.mrb[0].mxu0
        %931 = vmatprep.mubr.f32.mxu0 0.0
        %932 = vmatmul.mubr.f32.gmra.mrb[0].mxu0 %v838
        %v933 = vpop.f32.mrb[0].mxu0
        %v934 = vadd.f32 0.0, %v933
        %v935 = vpop.f32.mrb[0].mxu0
        %936 = vmatprep.mubr.f32.mxu0 0.0
        %937 = vmatmul.mubr.f32.gmra.mrb[0].mxu0 %v841
        %v938 = vpop.f32.mrb[0].mxu0
        %v939 = vadd.f32 0.0, %v938
        %v940 = vpop.f32.mrb[0].mxu0
        %941 = vmatprep.mubr.f32.mxu0 0.0
        %942 = vmatmul.mubr.f32.gmra.mrb[0].mxu0 %v844
        %v943 = vpop.f32.mrb[0].mxu0
        %v944 = vadd.f32 0.0, %v943
        %v945 = vpop.f32.mrb[0].mxu0
        %946 = vmatprep.mubr.f32.mxu0 0.0
        %947 = vmatmul.mubr.f32.gmra.mrb[0].mxu0 %v847
        %v948 = vpop.f32.mrb[0].mxu0
        %v949 = vadd.f32 0.0, %v948
        %v950 = vpop.f32.mrb[0].mxu0
        %951 = vmatprep.mubr.f32.mxu0 0.0
        %952 = vmatmul.mubr.f32.gmra.mrb[0].mxu0 %v850
        %v953 = vpop.f32.mrb[0].mxu0
        %v954 = vadd.f32 0.0, %v953
        %v955 = vpop.f32.mrb[0].mxu0
        %956 = vdwg.mxu0
        %v957 = vadd.f32 %v806, %v919
        %v958 = vadd.f32 %v807, %v924
        %v959 = vadd.f32 %v808, %v929
        %v960 = vadd.f32 %v809, %v934
        %v961 = vadd.f32 %v810, %v939
        %v962 = vadd.f32 %v811, %v944
        %v963 = vadd.f32 %v812, %v949
        %v964 = vadd.f32 %v813, %v954
        %965 = vst [vmem:[%s352] sm:$0xff] %v957
        %966 = vst [vmem:[%s352 + $0x8] sm:$0xff] %v958
        %967 = vst [vmem:[%s352 + $0x10] sm:$0xff] %v959
        %968 = vst [vmem:[%s352 + $0x18] sm:$0xff] %v960
        %969 = vst [vmem:[%s352 + $0x20] sm:$0xff] %v961
        %970 = vst [vmem:[%s352 + $0x28] sm:$0xff] %v962
        %971 = vst [vmem:[%s352 + $0x30] sm:$0xff] %v963
        %972 = vst [vmem:[%s352 + $0x38] sm:$0xff] %v964
        %s973 = smul.u32 8, %s14
        %p974 = scmp.lt.s32.totalorder %s973, 31
        %s975 = scalar_select %p974, %s973, 31
        %s976 = smul.addr %s975, 8
        %s977 = scalar_lea.vmem %s3, %s976
        // Predicated region
        $region71: #{hypergraph_transformer_forward.3} parent=65 // pred_check
          %p978 = pneg %p105
        $region72: #{hypergraph_transformer_forward.3} parent=65 // pred_check_branch
          %980 = sbr.rel (%p978) target = $region74
        $region73: #{hypergraph_transformer_forward.3} parent=65 // pred_region
          %s981 = smul.u32 8, %s14
        $region74: #{hypergraph_transformer_forward.3} parent=65 // pred_fallthru
          _
      $region66: #{hypergraph_transformer_forward.3} parent=5 // pred_fallthru
        _
      %p982 = scmp.le.s32.totalorder 2, %s9
      // Predicated region
      $region75: #{hypergraph_transformer_forward.3} parent=5 // pred_check
        %p983 = pneg %p982
      $region76: #{hypergraph_transformer_forward.3} parent=5 // pred_check_branch
        %985 = sbr.rel (%p983) target = $region78
      $region77: #{hypergraph_transformer_forward.3} parent=5 // pred_region
        %s986 = ssub.s32 %s9, 2
        // Predicated region
        $region79: #{hypergraph_transformer_forward.3} parent=77 // pred_check
          %p987 = pneg %p111
        $region80: #{hypergraph_transformer_forward.3} parent=77 // pred_check_branch
          %989 = sbr.rel (%p987) target = $region82
        $region81: #{hypergraph_transformer_forward.3} parent=77 // pred_region
          %s990 = smul.u32 8, %s15
          %p991 = scmp.lt.s32.totalorder %s990, 31
          %s992 = scalar_select %p991, %s990, 31
          %s993 = smul.addr %s992, 8
          %s994 = scalar_lea.vmem %s3, %s993
        $region82: #{hypergraph_transformer_forward.3} parent=77 // pred_fallthru
          _
      $region78: #{hypergraph_transformer_forward.3} parent=5 // pred_fallthru
        _
    $region6: #{hypergraph_transformer_forward.3} parent=1 // loop_footer
      %s13 = sadd.s32 1, %s9
    $region7: #{hypergraph_transformer_forward.3} parent=1 // loop_footer_branch
      %8 = sbr.rel target = $region3
    $region8: #{hypergraph_transformer_forward.3} parent=1 // loop_exit
      _

</llo_original>
